<compile_context>
chip_gen: v7x
topology: tpu7x:2x2x1
jax: 0.10.0
libtpu: 0.0.40
codegen_flags: <defaults>
</compile_context>

<pallas_src>
import functools

import jax
import jax.numpy as jnp
from jax.experimental import pallas as pl
from jax.experimental.pallas import tpu as pltpu


# ---------------------------------------------------------------------------
# Shared math helpers (f32)
# ---------------------------------------------------------------------------
def _layernorm(x, w, b, eps=1e-5):
    # PyTorch LayerNorm: biased variance, eps inside the sqrt, fp32 compute.
    m = jnp.mean(x, axis=-1, keepdims=True)
    v = jnp.mean((x - m) ** 2, axis=-1, keepdims=True)
    return (x - m) * jax.lax.rsqrt(v + eps) * w + b


# ---------------------------------------------------------------------------
# One Pallas kernel: full transformer stack + ln_final + EOT select + text_projection
# grid = (n_layers,), per-layer weights streamed via BlockSpec.
# ---------------------------------------------------------------------------
def text_encoder_kernel(
    # constant-index-map inputs (DMA'd once, resident across the layer grid)
    x_ref,                     # (B, S, D) f32   token+pos embeddings
    mask_ref,                  # (S, S)   f32   additive causal bias (0 / -1e30)
    onehot_ref,                # (B, S, 1) f32  EOT-token selector
    lnf_w_ref, lnf_b_ref,      # (1, D)   f32   ln_final
    tproj_ref,                 # (D, E)   f32   text_projection
    # per-layer streamed weights (leading layer axis)
    ln1_w_ref, ln1_b_ref,      # (1, 1, D)  f32
    in_w_ref, in_b_ref,        # (1, D, 3D) bf16 / (1, 1, 3D) f32
    out_w_ref, out_b_ref,      # (1, D, D)  bf16 / (1, 1, D)  f32
    ln2_w_ref, ln2_b_ref,      # (1, 1, D)  f32
    fc_w_ref, fc_b_ref,        # (1, D, 4D) bf16 / (1, 1, 4D) f32
    proj_w_ref, proj_b_ref,    # (1, 4D, D) bf16 / (1, 1, D)  f32
    # output
    o_ref,                     # (B, E) f32   (written only at the last layer)
    # scratch
    resid_ref,                 # (B*S, D) f32  residual stream
    *, n_head,
):
    layer = pl.program_id(0)
    n_layers = pl.num_programs(0)
    B, S, D = x_ref.shape
    H = n_head
    hd = D // H
    N = B * S

    @pl.when(layer == 0)
    def _():
        resid_ref[...] = x_ref[...].reshape(N, D)

    x = resid_ref[...]                                             # (N, D) f32

    # ---------------- attention branch: x + attn(ln_1(x)) -----------------
    h = _layernorm(x, ln1_w_ref[0], ln1_b_ref[0])                  # (N, D) f32
    qkv = jnp.dot(h.astype(jnp.bfloat16), in_w_ref[0],
                  preferred_element_type=jnp.float32) + in_b_ref[0]  # (N, 3D) f32
    # 1/sqrt(hd) already folded into the Q columns of in_w_t / in_b.

    q3 = qkv[:, 0:D].reshape(B, S, D).astype(jnp.bfloat16)
    k3 = qkv[:, D:2 * D].reshape(B, S, D).astype(jnp.bfloat16)
    v3 = qkv[:, 2 * D:3 * D].reshape(B, S, D).astype(jnp.bfloat16)

    # Hoisted causal bias, broadcast once (not per head / per layer op chain).
    mask_b = jnp.broadcast_to(mask_ref[...][None, :, :], (B, S, S))  # (B, S, S) f32

    ctxs = []
    for hh in range(H):                                            # static unroll over heads
        lo = hh * hd
        qh = q3[:, :, lo:lo + hd]                                  # (B, S, hd) bf16
        kh = k3[:, :, lo:lo + hd]
        vh = v3[:, :, lo:lo + hd]
        sc = jnp.einsum("bqd,bkd->bqk", qh, kh,
                        preferred_element_type=jnp.float32)        # (B, S, S) f32
        sc = sc + mask_b                                           # single add (mask hoisted)
        sc = sc - jnp.max(sc, axis=-1, keepdims=True)
        p = jnp.exp(sc)
        p = p * pl.reciprocal(jnp.sum(p, axis=-1, keepdims=True), approx=True)
        ctx = jnp.einsum("bqk,bkd->bqd", p.astype(jnp.bfloat16), vh,
                         preferred_element_type=jnp.float32)       # (B, S, hd) f32
        ctxs.append(ctx.reshape(N, hd).astype(jnp.bfloat16))

    # Single out-projection matmul over the full D contraction (instead of H K=hd matmuls).
    ctx_all = jnp.concatenate(ctxs, axis=-1)                       # (N, D) bf16
    attn = jnp.dot(ctx_all, out_w_ref[0],
                   preferred_element_type=jnp.float32) + out_b_ref[0]
    x1 = x + attn                                                  # (N, D) f32

    # ---------------- MLP branch: x1 + c_proj(gelu(c_fc(ln_2(x1)))) --------
    g = _layernorm(x1, ln2_w_ref[0], ln2_b_ref[0])
    fc = jnp.dot(g.astype(jnp.bfloat16), fc_w_ref[0],
                 preferred_element_type=jnp.float32) + fc_b_ref[0]  # (N, 4D) f32
    fc = fc * jax.nn.sigmoid(1.702 * fc)                           # QuickGELU (f32)
    mlp = jnp.dot(fc.astype(jnp.bfloat16), proj_w_ref[0],
                  preferred_element_type=jnp.float32) + proj_b_ref[0]

    new_resid = x1 + mlp
    resid_ref[...] = new_resid

    # ------------- fused head: ln_final + EOT select + text_projection -----
    @pl.when(layer == n_layers - 1)
    def _():
        # select EOT token per sequence first (ln is per-row, so select-then-ln is exact)
        sel = jnp.sum(new_resid.reshape(B, S, D) * onehot_ref[...], axis=1)   # (B, D)
        sel = _layernorm(sel, lnf_w_ref[...], lnf_b_ref[...])
        o_ref[...] = jnp.dot(sel, tproj_ref[...], preferred_element_type=jnp.float32)


def _vmem_limit_bytes(B, S, D, E):
    """Computed VMEM hint: weight stream (double buffered) + residents + activations."""
    w_layer_bf16 = 2 * (3 * D * D + D * D + 4 * D * D + 4 * D * D)      # bf16 matrices
    w_layer_f32 = 4 * (3 * D + D + 4 * D + D + 4 * D)                   # biases + ln params
    stream = 2 * (w_layer_bf16 + w_layer_f32)                           # double buffered
    resident = 4 * (B * S * D + S * S + B * S + 2 * D + D * E)          # const-map inputs
    scratch = 4 * B * S * D                                             # residual stream
    acts = 4 * B * S * (10 * D) + 4 * 3 * B * S * S                     # rough live set
    est = stream + 2 * resident + scratch + acts + (8 << 20)
    try:
        cap = pltpu.get_tpu_info().vmem_capacity_bytes
    except Exception:  # pragma: no cover - conservative fallback
        cap = 64 << 20
    return int(min(max(est, 32 << 20), int(0.75 * cap)))


def text_encoder_transformer(x, mask_bias, onehot, lnf_w, lnf_b, tproj, sp, n_head):
    """x: (B, S, D) f32 embeddings; sp: dict of stacked per-layer params (leading layer dim)."""
    B, S, D = x.shape
    E = tproj.shape[1]
    L = sp["in_w_t"].shape[0]
    N = B * S

    const3 = lambda l: (0, 0, 0)
    const2 = lambda l: (0, 0)
    layer3 = lambda l: (l, 0, 0)

    def wspec(arr):
        return pl.BlockSpec((1,) + tuple(arr.shape[1:]), layer3)

    const_ops = (x, mask_bias, onehot, lnf_w, lnf_b, tproj)
    weight_ops = (
        sp["ln1_w"], sp["ln1_b"],
        sp["in_w_t"], sp["in_b"],
        sp["out_w_t"], sp["out_b"],
        sp["ln2_w"], sp["ln2_b"],
        sp["fc_w_t"], sp["fc_b"],
        sp["proj_w_t"], sp["proj_b"],
    )

    in_specs = [
        pl.BlockSpec((B, S, D), const3),     # x
        pl.BlockSpec((S, S), const2),        # causal bias
        pl.BlockSpec((B, S, 1), const3),     # EOT one-hot
        pl.BlockSpec((1, D), const2),        # ln_final w
        pl.BlockSpec((1, D), const2),        # ln_final b
        pl.BlockSpec((D, E), const2),        # text_projection
    ] + [wspec(a) for a in weight_ops]

    kernel = functools.partial(text_encoder_kernel, n_head=n_head)
    return pl.pallas_call(
        kernel,
        out_shape=jax.ShapeDtypeStruct((B, E), jnp.float32),
        grid_spec=pltpu.PrefetchScalarGridSpec(
            num_scalar_prefetch=0,
            grid=(L,),
            in_specs=in_specs,
            out_specs=pl.BlockSpec((B, E), const2),
            scratch_shapes=[pltpu.VMEM((N, D), jnp.float32)],
        ),
        compiler_params=pltpu.CompilerParams(
            dimension_semantics=("arbitrary",),            # layers are sequential
            vmem_limit_bytes=_vmem_limit_bytes(B, S, D, E),
        ),
    )(*const_ops, *weight_ops)


# ---------------------------------------------------------------------------
# Host-side parameter packing (pre-transpose, fold q-scale, cast to bf16)
# ---------------------------------------------------------------------------
def pack_transformer_params(layers, n_head, d_model):
    D = d_model
    hd = D // n_head
    q_scale = jnp.concatenate(
        [jnp.full((D,), 1.0 / float(hd) ** 0.5, jnp.float32),
         jnp.ones((2 * D,), jnp.float32)])

    def stack(fn):
        return jnp.stack([fn(p) for p in layers], axis=0)

    return {
        "ln1_w":    stack(lambda p: p["ln1_w"].reshape(1, D)),
        "ln1_b":    stack(lambda p: p["ln1_b"].reshape(1, D)),
        "in_w_t":   stack(lambda p: (p["in_w"].T * q_scale[None, :]).astype(jnp.bfloat16)),
        "in_b":     stack(lambda p: (p["in_b"] * q_scale).reshape(1, 3 * D)),
        "out_w_t":  stack(lambda p: p["out_w"].T.astype(jnp.bfloat16)),
        "out_b":    stack(lambda p: p["out_b"].reshape(1, D)),
        "ln2_w":    stack(lambda p: p["ln2_w"].reshape(1, D)),
        "ln2_b":    stack(lambda p: p["ln2_b"].reshape(1, D)),
        "fc_w_t":   stack(lambda p: p["fc_w"].T.astype(jnp.bfloat16)),
        "fc_b":     stack(lambda p: p["fc_b"].reshape(1, 4 * D)),
        "proj_w_t": stack(lambda p: p["proj_w"].T.astype(jnp.bfloat16)),
        "proj_b":   stack(lambda p: p["proj_b"].reshape(1, D)),
    }


def text_encoder_forward(text, params, n_head):
    # TODO(synk): the vocab-sized token-embedding gather and the EOT argmax/one-hot are done
    # with plain XLA ops in the wrapper; a Pallas DMA-gather only pays off at real vocab sizes.
    x = jnp.take(params["token_embedding"], text, axis=0) + params["positional_embedding"]
    x = x.astype(jnp.float32)                                      # (B, S, D)
    B, S = text.shape
    # additive causal bias, built once host-side (hoisted out of the kernel loop)
    mask_bias = jnp.where(jnp.arange(S)[None, :] > jnp.arange(S)[:, None],
                          jnp.float32(-1e30), jnp.float32(0.0)).astype(jnp.float32)
    eot = jnp.argmax(text, axis=-1)                                # (B,)
    onehot = jax.nn.one_hot(eot, S, dtype=jnp.float32)[..., None]  # (B, S, 1)
    return text_encoder_transformer(
        x, mask_bias, onehot,
        params["ln_f_w"], params["ln_f_b"], params["text_projection"],
        params["stacked"], n_head)


# ---------------------------------------------------------------------------
# Pure-JAX f32 reference (mirrors the PyTorch module exactly)
# ---------------------------------------------------------------------------
def _ref_layernorm(x, w, b, eps=1e-5):
    m = jnp.mean(x, axis=-1, keepdims=True)
    v = jnp.mean((x - m) ** 2, axis=-1, keepdims=True)
    return (x - m) / jnp.sqrt(v + eps) * w + b


def _ref_block(x, p, n_head, mask_bias):
    S, B, D = x.shape
    H = n_head
    hd = D // H
    h = _ref_layernorm(x, p["ln1_w"], p["ln1_b"])
    qkv = h @ p["in_w"].T + p["in_b"]
    q, k, v = qkv[..., :D], qkv[..., D:2 * D], qkv[..., 2 * D:]
    q = jnp.transpose((q / jnp.sqrt(hd)).reshape(S, B * H, hd), (1, 0, 2))
    k = jnp.transpose(k.reshape(S, B * H, hd), (1, 0, 2))
    v = jnp.transpose(v.reshape(S, B * H, hd), (1, 0, 2))
    sc = jnp.einsum("bqd,bkd->bqk", q, k) + mask_bias
    pa = jax.nn.softmax(sc, axis=-1)
    ctx = jnp.einsum("bqk,bkd->bqd", pa, v)
    ctx = jnp.transpose(ctx, (1, 0, 2)).reshape(S, B, D)
    x = x + ctx @ p["out_w"].T + p["out_b"]
    g = _ref_layernorm(x, p["ln2_w"], p["ln2_b"])
    fc = g @ p["fc_w"].T + p["fc_b"]
    fc = fc * jax.nn.sigmoid(1.702 * fc)
    return x + fc @ p["proj_w"].T + p["proj_b"]


def reference_text_encoder(text, token_embedding, positional_embedding,
                           layers, n_head, ln_f_w, ln_f_b, text_projection):
    B, S = text.shape
    x = token_embedding[text] + positional_embedding               # (B, S, D)
    x = jnp.transpose(x, (1, 0, 2))                                # (S, B, D)
    mask_bias = jnp.where(jnp.arange(S)[None, :] > jnp.arange(S)[:, None],
                          -jnp.inf, 0.0).astype(jnp.float32)
    for p in layers:
        x = _ref_block(x, p, n_head, mask_bias)
    x = jnp.transpose(x, (1, 0, 2))                                # (B, S, D)
    x = _ref_layernorm(x, ln_f_w, ln_f_b)
    sel = x[jnp.arange(B), jnp.argmax(text, axis=-1)]
    return sel @ text_projection


# ---------------------------------------------------------------------------
# Main
# ---------------------------------------------------------------------------
if __name__ == "__main__":
    B, S, D, H, L = 2, 8, 32, 4, 4     # batch, context, width, heads, layers (toy)
    V, E = 64, 64                      # vocab, embed_dim (toy)

    key = jax.random.PRNGKey(0)

    def normal(k, shape, scale=0.02):
        return (scale * jax.random.normal(k, shape)).astype(jnp.float32)

    keys = jax.random.split(key, L + 2)
    layers = []
    for li in range(L):
        ks = jax.random.split(keys[li], 12)
        layers.append({
            "ln1_w": 1.0 + normal(ks[0], (D,)),
            "ln1_b": normal(ks[1], (D,)),
            "in_w":  normal(ks[2], (3 * D, D)),
            "in_b":  normal(ks[3], (3 * D,)),
            "out_w": normal(ks[4], (D, D)),
            "out_b": normal(ks[5], (D,)),
            "ln2_w": 1.0 + normal(ks[6], (D,)),
            "ln2_b": normal(ks[7], (D,)),
            "fc_w":  normal(ks[8], (4 * D, D)),
            "fc_b":  normal(ks[9], (4 * D,)),
            "proj_w": normal(ks[10], (D, 4 * D)),
            "proj_b": normal(ks[11], (D,)),
        })
    kg = jax.random.split(keys[L], 6)
    token_embedding = normal(kg[0], (V, D))
    positional_embedding = normal(kg[1], (S, D), 0.01)
    ln_f_w = 1.0 + normal(kg[2], (D,))
    ln_f_b = normal(kg[3], (D,))
    text_projection = normal(kg[4], (D, E))

    text = jax.random.randint(keys[L + 1], (B, S), 1, V - 1, dtype=jnp.int32)
    text = text.at[0, 5].set(V - 1).at[1, 3].set(V - 1)   # place EOT (= max id) tokens

    params = {
        "token_embedding": token_embedding,
        "positional_embedding": positional_embedding,
        "stacked": pack_transformer_params(layers, H, D),
        "ln_f_w": ln_f_w.reshape(1, D),
        "ln_f_b": ln_f_b.reshape(1, D),
        "text_projection": text_projection,
    }

    out = jax.block_until_ready(text_encoder_forward(text, params, H))
    ref = reference_text_encoder(text, token_embedding, positional_embedding,
                                 layers, H, ln_f_w, ln_f_b, text_projection)

    assert out.shape == (B, E)
    err = float(jnp.max(jnp.abs(out - ref)))
    # bf16 matmul inputs with f32 accumulation + approx EUP reciprocal in the softmax
    # denominator vs. the exact f32 reference -> loose tolerance (documented, inference-only).
    assert jnp.allclose(out, ref, rtol=2e-2, atol=2e-2), f"max abs err = {err}"
    print("KERNEL_OK")
</pallas_src>

<mosaic_0001>
module attributes {stable_mosaic.version = 11 : i64} {
  func.func @text_encoder_kernel(%arg0: i32, %arg1: memref<2x8x32xf32, #tpu.memory_space<vmem>>, %arg2: memref<8x8xf32, #tpu.memory_space<vmem>>, %arg3: memref<2x8x1xf32, #tpu.memory_space<vmem>>, %arg4: memref<1x32xf32, #tpu.memory_space<vmem>>, %arg5: memref<1x32xf32, #tpu.memory_space<vmem>>, %arg6: memref<32x64xf32, #tpu.memory_space<vmem>>, %arg7: memref<1x1x32xf32, #tpu.memory_space<vmem>>, %arg8: memref<1x1x32xf32, #tpu.memory_space<vmem>>, %arg9: memref<1x32x96xbf16, #tpu.memory_space<vmem>>, %arg10: memref<1x1x96xf32, #tpu.memory_space<vmem>>, %arg11: memref<1x32x32xbf16, #tpu.memory_space<vmem>>, %arg12: memref<1x1x32xf32, #tpu.memory_space<vmem>>, %arg13: memref<1x1x32xf32, #tpu.memory_space<vmem>>, %arg14: memref<1x1x32xf32, #tpu.memory_space<vmem>>, %arg15: memref<1x32x128xbf16, #tpu.memory_space<vmem>>, %arg16: memref<1x1x128xf32, #tpu.memory_space<vmem>>, %arg17: memref<1x128x32xbf16, #tpu.memory_space<vmem>>, %arg18: memref<1x1x32xf32, #tpu.memory_space<vmem>>, %arg19: memref<2x64xf32, #tpu.memory_space<vmem>>, %arg20: memref<16x32xf32, #tpu.memory_space<vmem>>) attributes {dimension_semantics = [#tpu.dimension_semantics<arbitrary>], iteration_bounds = array<i64: 4>, scalar_prefetch = 0 : i64, scratch_operands = 1 : i64, tpu.core_type = #tpu.core_type<tc>, window_params = [{pipeline_mode = #tpu.pipeline_mode<synchronous>, transform_indices = @transform_0, window_bounds = array<i64: 2, 8, 32>}, {pipeline_mode = #tpu.pipeline_mode<synchronous>, transform_indices = @transform_1, window_bounds = array<i64: 8, 8>}, {pipeline_mode = #tpu.pipeline_mode<synchronous>, transform_indices = @transform_2, window_bounds = array<i64: 2, 8, 1>}, {pipeline_mode = #tpu.pipeline_mode<synchronous>, transform_indices = @transform_3, window_bounds = array<i64: 1, 32>}, {pipeline_mode = #tpu.pipeline_mode<synchronous>, transform_indices = @transform_4, window_bounds = array<i64: 1, 32>}, {pipeline_mode = #tpu.pipeline_mode<synchronous>, transform_indices = @transform_5, window_bounds = array<i64: 32, 64>}, {transform_indices = @transform_6, window_bounds = array<i64: 1, 1, 32>}, {transform_indices = @transform_7, window_bounds = array<i64: 1, 1, 32>}, {transform_indices = @transform_8, window_bounds = array<i64: 1, 32, 96>}, {transform_indices = @transform_9, window_bounds = array<i64: 1, 1, 96>}, {transform_indices = @transform_10, window_bounds = array<i64: 1, 32, 32>}, {transform_indices = @transform_11, window_bounds = array<i64: 1, 1, 32>}, {transform_indices = @transform_12, window_bounds = array<i64: 1, 1, 32>}, {transform_indices = @transform_13, window_bounds = array<i64: 1, 1, 32>}, {transform_indices = @transform_14, window_bounds = array<i64: 1, 32, 128>}, {transform_indices = @transform_15, window_bounds = array<i64: 1, 1, 128>}, {transform_indices = @transform_16, window_bounds = array<i64: 1, 128, 32>}, {transform_indices = @transform_17, window_bounds = array<i64: 1, 1, 32>}, {pipeline_mode = #tpu.pipeline_mode<synchronous>, transform_indices = @transform_18, window_bounds = array<i64: 2, 64>}]} {
    %c0_i32 = arith.constant 0 : i32
    %0 = arith.cmpi eq, %arg0, %c0_i32 : i32
    %1 = arith.extui %0 : i1 to i32
    %c0_i32_0 = arith.constant 0 : i32
    %2 = arith.cmpi ne, %1, %c0_i32_0 : i32
    scf.if %2 {
      %c0_74 = arith.constant 0 : index
      %c0_75 = arith.constant 0 : index
      %c0_76 = arith.constant 0 : index
      %191 = vector.load %arg1[%c0_74, %c0_75, %c0_76] : memref<2x8x32xf32, #tpu.memory_space<vmem>>, vector<2x8x32xf32>
      %192 = vector.shape_cast %191 : vector<2x8x32xf32> to vector<16x32xf32>
      %c0_77 = arith.constant 0 : index
      %c0_78 = arith.constant 0 : index
      %193 = vector.load %arg20[%c0_77, %c0_78] : memref<16x32xf32, #tpu.memory_space<vmem>>, vector<16x32xf32>
      tpu.vector_store %arg20[%c0_77, %c0_78], %192 {strides = array<i32>} : memref<16x32xf32, #tpu.memory_space<vmem>>, vector<16x32xf32>,
    } else {
    }
    %c0 = arith.constant 0 : index
    %c0_1 = arith.constant 0 : index
    %3 = vector.load %arg20[%c0, %c0_1] : memref<16x32xf32, #tpu.memory_space<vmem>>, vector<16x32xf32>
    %c0_2 = arith.constant 0 : index
    %c0_3 = arith.constant 0 : index
    %c0_4 = arith.constant 0 : index
    %4 = vector.load %arg7[%c0_2, %c0_3, %c0_4] : memref<1x1x32xf32, #tpu.memory_space<vmem>>, vector<1x1x32xf32>
    %5 = vector.shape_cast %4 : vector<1x1x32xf32> to vector<1x32xf32>
    %c0_5 = arith.constant 0 : index
    %c0_6 = arith.constant 0 : index
    %c0_7 = arith.constant 0 : index
    %6 = vector.load %arg8[%c0_5, %c0_6, %c0_7] : memref<1x1x32xf32, #tpu.memory_space<vmem>>, vector<1x1x32xf32>
    %7 = vector.shape_cast %6 : vector<1x1x32xf32> to vector<1x32xf32>
    %cst = arith.constant dense<0.000000e+00> : vector<16xf32>
    %8 = vector.multi_reduction <add>, %3, %cst [1] : vector<16x32xf32> to vector<16xf32>
    %9 = vector.shape_cast %8 : vector<16xf32> to vector<16x1xf32>
    %cst_8 = arith.constant 3.200000e+01 : f32
    %10 = vector.broadcast %cst_8 : f32 to vector<16x1xf32>
    %11 = arith.divf %9, %10 : vector<16x1xf32>
    %12 = vector.broadcast %11 : vector<16x1xf32> to vector<16x32xf32>
    %13 = arith.subf %3, %12 : vector<16x32xf32>
    %14 = arith.mulf %13, %13 : vector<16x32xf32>
    %cst_9 = arith.constant dense<0.000000e+00> : vector<16xf32>
    %15 = vector.multi_reduction <add>, %14, %cst_9 [1] : vector<16x32xf32> to vector<16xf32>
    %16 = vector.shape_cast %15 : vector<16xf32> to vector<16x1xf32>
    %cst_10 = arith.constant 3.200000e+01 : f32
    %17 = vector.broadcast %cst_10 : f32 to vector<16x1xf32>
    %18 = arith.divf %16, %17 : vector<16x1xf32>
    %19 = vector.broadcast %11 : vector<16x1xf32> to vector<16x32xf32>
    %20 = arith.subf %3, %19 : vector<16x32xf32>
    %cst_11 = arith.constant 9.99999974E-6 : f32
    %21 = vector.broadcast %cst_11 : f32 to vector<16x1xf32>
    %22 = arith.addf %18, %21 : vector<16x1xf32>
    %23 = math.rsqrt %22 : vector<16x1xf32>
    %24 = vector.broadcast %23 : vector<16x1xf32> to vector<16x32xf32>
    %25 = arith.mulf %20, %24 : vector<16x32xf32>
    %26 = vector.broadcast %5 : vector<1x32xf32> to vector<16x32xf32>
    %27 = arith.mulf %25, %26 : vector<16x32xf32>
    %28 = vector.broadcast %7 : vector<1x32xf32> to vector<16x32xf32>
    %29 = arith.addf %27, %28 : vector<16x32xf32>
    %30 = arith.truncf %29 : vector<16x32xf32> to vector<16x32xbf16>
    %c0_12 = arith.constant 0 : index
    %c0_13 = arith.constant 0 : index
    %c0_14 = arith.constant 0 : index
    %31 = vector.load %arg9[%c0_12, %c0_13, %c0_14] : memref<1x32x96xbf16, #tpu.memory_space<vmem>>, vector<1x32x96xbf16>
    %32 = vector.shape_cast %31 : vector<1x32x96xbf16> to vector<32x96xbf16>
    %cst_15 = arith.constant dense<0.000000e+00> : vector<16x96xf32>
    %33 = tpu.matmul %30, %32, %cst_15 {dimension_numbers = #tpu.dot_dimension_numbers<[1], [0], [0], [1], [0, 0, 1, 1], [], []>} : vector<16x32xbf16>, vector<32x96xbf16>, vector<16x96xf32> -> vector<16x96xf32>
    %c0_16 = arith.constant 0 : index
    %c0_17 = arith.constant 0 : index
    %c0_18 = arith.constant 0 : index
    %34 = vector.load %arg10[%c0_16, %c0_17, %c0_18] : memref<1x1x96xf32, #tpu.memory_space<vmem>>, vector<1x1x96xf32>
    %35 = vector.shape_cast %34 : vector<1x1x96xf32> to vector<1x96xf32>
    %36 = vector.broadcast %35 : vector<1x96xf32> to vector<16x96xf32>
    %37 = arith.addf %33, %36 : vector<16x96xf32>
    %38 = vector.extract_strided_slice %37 {offsets = [0, 0], sizes = [16, 32], strides = [1, 1]} : vector<16x96xf32> to vector<16x32xf32>
    %39 = vector.shape_cast %38 : vector<16x32xf32> to vector<2x8x32xf32>
    %40 = arith.truncf %39 : vector<2x8x32xf32> to vector<2x8x32xbf16>
    %41 = vector.extract_strided_slice %37 {offsets = [0, 32], sizes = [16, 32], strides = [1, 1]} : vector<16x96xf32> to vector<16x32xf32>
    %42 = vector.shape_cast %41 : vector<16x32xf32> to vector<2x8x32xf32>
    %43 = arith.truncf %42 : vector<2x8x32xf32> to vector<2x8x32xbf16>
    %44 = vector.extract_strided_slice %37 {offsets = [0, 64], sizes = [16, 32], strides = [1, 1]} : vector<16x96xf32> to vector<16x32xf32>
    %45 = vector.shape_cast %44 : vector<16x32xf32> to vector<2x8x32xf32>
    %46 = arith.truncf %45 : vector<2x8x32xf32> to vector<2x8x32xbf16>
    %c0_19 = arith.constant 0 : index
    %c0_20 = arith.constant 0 : index
    %47 = vector.load %arg2[%c0_19, %c0_20] : memref<8x8xf32, #tpu.memory_space<vmem>>, vector<8x8xf32>
    %48 = vector.shape_cast %47 : vector<8x8xf32> to vector<1x8x8xf32>
    %49 = vector.shape_cast %48 : vector<1x8x8xf32> to vector<1x8x8xf32>
    %50 = vector.broadcast %49 : vector<1x8x8xf32> to vector<2x8x8xf32>
    %51 = vector.extract_strided_slice %40 {offsets = [0, 0, 0], sizes = [2, 8, 8], strides = [1, 1, 1]} : vector<2x8x32xbf16> to vector<2x8x8xbf16>
    %52 = vector.extract_strided_slice %43 {offsets = [0, 0, 0], sizes = [2, 8, 8], strides = [1, 1, 1]} : vector<2x8x32xbf16> to vector<2x8x8xbf16>
    %53 = vector.extract_strided_slice %46 {offsets = [0, 0, 0], sizes = [2, 8, 8], strides = [1, 1, 1]} : vector<2x8x32xbf16> to vector<2x8x8xbf16>
    "tpu.trace_start"() <{level = 10 : i32, message = "bqd,bkd->bqk"}> : () -> ()
    %cst_21 = arith.constant dense<0.000000e+00> : vector<2x8x8xf32>
    %54 = tpu.matmul %51, %52, %cst_21 {dimension_numbers = #tpu.dot_dimension_numbers<[2], [2], [1], [1], [0, 0, 0, 1, 1, 1], [0], [0]>} : vector<2x8x8xbf16>, vector<2x8x8xbf16>, vector<2x8x8xf32> -> vector<2x8x8xf32>
    "tpu.trace_stop"() : () -> ()
    %55 = arith.addf %54, %50 : vector<2x8x8xf32>
    %cst_22 = arith.constant dense<0xFF800000> : vector<2x8xf32>
    %56 = vector.multi_reduction <maximumf>, %55, %cst_22 [2] : vector<2x8x8xf32> to vector<2x8xf32>
    %57 = vector.shape_cast %56 : vector<2x8xf32> to vector<2x8x1xf32>
    %58 = vector.broadcast %57 : vector<2x8x1xf32> to vector<2x8x8xf32>
    %59 = arith.subf %55, %58 : vector<2x8x8xf32>
    %60 = math.exp %59 : vector<2x8x8xf32>
    %cst_23 = arith.constant dense<0.000000e+00> : vector<2x8xf32>
    %61 = vector.multi_reduction <add>, %60, %cst_23 [2] : vector<2x8x8xf32> to vector<2x8xf32>
    %62 = vector.shape_cast %61 : vector<2x8xf32> to vector<2x8x1xf32>
    %63 = tpu.reciprocal %62 {approx = true} : vector<2x8x1xf32> -> vector<2x8x1xf32>
    %64 = vector.broadcast %63 : vector<2x8x1xf32> to vector<2x8x8xf32>
    %65 = arith.mulf %60, %64 : vector<2x8x8xf32>
    %66 = arith.truncf %65 : vector<2x8x8xf32> to vector<2x8x8xbf16>
    "tpu.trace_start"() <{level = 10 : i32, message = "bqk,bkd->bqd"}> : () -> ()
    %cst_24 = arith.constant dense<0.000000e+00> : vector<2x8x8xf32>
    %67 = tpu.matmul %66, %53, %cst_24 {dimension_numbers = #tpu.dot_dimension_numbers<[2], [1], [1], [2], [0, 0, 0, 1, 1, 2], [0], [0]>} : vector<2x8x8xbf16>, vector<2x8x8xbf16>, vector<2x8x8xf32> -> vector<2x8x8xf32>
    "tpu.trace_stop"() : () -> ()
    %68 = vector.shape_cast %67 : vector<2x8x8xf32> to vector<16x8xf32>
    %69 = arith.truncf %68 : vector<16x8xf32> to vector<16x8xbf16>
    %70 = vector.extract_strided_slice %40 {offsets = [0, 0, 8], sizes = [2, 8, 8], strides = [1, 1, 1]} : vector<2x8x32xbf16> to vector<2x8x8xbf16>
    %71 = vector.extract_strided_slice %43 {offsets = [0, 0, 8], sizes = [2, 8, 8], strides = [1, 1, 1]} : vector<2x8x32xbf16> to vector<2x8x8xbf16>
    %72 = vector.extract_strided_slice %46 {offsets = [0, 0, 8], sizes = [2, 8, 8], strides = [1, 1, 1]} : vector<2x8x32xbf16> to vector<2x8x8xbf16>
    "tpu.trace_start"() <{level = 10 : i32, message = "bqd,bkd->bqk"}> : () -> ()
    %cst_25 = arith.constant dense<0.000000e+00> : vector<2x8x8xf32>
    %73 = tpu.matmul %70, %71, %cst_25 {dimension_numbers = #tpu.dot_dimension_numbers<[2], [2], [1], [1], [0, 0, 0, 1, 1, 1], [0], [0]>} : vector<2x8x8xbf16>, vector<2x8x8xbf16>, vector<2x8x8xf32> -> vector<2x8x8xf32>
    "tpu.trace_stop"() : () -> ()
    %74 = arith.addf %73, %50 : vector<2x8x8xf32>
    %cst_26 = arith.constant dense<0xFF800000> : vector<2x8xf32>
    %75 = vector.multi_reduction <maximumf>, %74, %cst_26 [2] : vector<2x8x8xf32> to vector<2x8xf32>
    %76 = vector.shape_cast %75 : vector<2x8xf32> to vector<2x8x1xf32>
    %77 = vector.broadcast %76 : vector<2x8x1xf32> to vector<2x8x8xf32>
    %78 = arith.subf %74, %77 : vector<2x8x8xf32>
    %79 = math.exp %78 : vector<2x8x8xf32>
    %cst_27 = arith.constant dense<0.000000e+00> : vector<2x8xf32>
    %80 = vector.multi_reduction <add>, %79, %cst_27 [2] : vector<2x8x8xf32> to vector<2x8xf32>
    %81 = vector.shape_cast %80 : vector<2x8xf32> to vector<2x8x1xf32>
    %82 = tpu.reciprocal %81 {approx = true} : vector<2x8x1xf32> -> vector<2x8x1xf32>
    %83 = vector.broadcast %82 : vector<2x8x1xf32> to vector<2x8x8xf32>
    %84 = arith.mulf %79, %83 : vector<2x8x8xf32>
    %85 = arith.truncf %84 : vector<2x8x8xf32> to vector<2x8x8xbf16>
    "tpu.trace_start"() <{level = 10 : i32, message = "bqk,bkd->bqd"}> : () -> ()
    %cst_28 = arith.constant dense<0.000000e+00> : vector<2x8x8xf32>
    %86 = tpu.matmul %85, %72, %cst_28 {dimension_numbers = #tpu.dot_dimension_numbers<[2], [1], [1], [2], [0, 0, 0, 1, 1, 2], [0], [0]>} : vector<2x8x8xbf16>, vector<2x8x8xbf16>, vector<2x8x8xf32> -> vector<2x8x8xf32>
    "tpu.trace_stop"() : () -> ()
    %87 = vector.shape_cast %86 : vector<2x8x8xf32> to vector<16x8xf32>
    %88 = arith.truncf %87 : vector<16x8xf32> to vector<16x8xbf16>
    %89 = vector.extract_strided_slice %40 {offsets = [0, 0, 16], sizes = [2, 8, 8], strides = [1, 1, 1]} : vector<2x8x32xbf16> to vector<2x8x8xbf16>
    %90 = vector.extract_strided_slice %43 {offsets = [0, 0, 16], sizes = [2, 8, 8], strides = [1, 1, 1]} : vector<2x8x32xbf16> to vector<2x8x8xbf16>
    %91 = vector.extract_strided_slice %46 {offsets = [0, 0, 16], sizes = [2, 8, 8], strides = [1, 1, 1]} : vector<2x8x32xbf16> to vector<2x8x8xbf16>
    "tpu.trace_start"() <{level = 10 : i32, message = "bqd,bkd->bqk"}> : () -> ()
    %cst_29 = arith.constant dense<0.000000e+00> : vector<2x8x8xf32>
    %92 = tpu.matmul %89, %90, %cst_29 {dimension_numbers = #tpu.dot_dimension_numbers<[2], [2], [1], [1], [0, 0, 0, 1, 1, 1], [0], [0]>} : vector<2x8x8xbf16>, vector<2x8x8xbf16>, vector<2x8x8xf32> -> vector<2x8x8xf32>
    "tpu.trace_stop"() : () -> ()
    %93 = arith.addf %92, %50 : vector<2x8x8xf32>
    %cst_30 = arith.constant dense<0xFF800000> : vector<2x8xf32>
    %94 = vector.multi_reduction <maximumf>, %93, %cst_30 [2] : vector<2x8x8xf32> to vector<2x8xf32>
    %95 = vector.shape_cast %94 : vector<2x8xf32> to vector<2x8x1xf32>
    %96 = vector.broadcast %95 : vector<2x8x1xf32> to vector<2x8x8xf32>
    %97 = arith.subf %93, %96 : vector<2x8x8xf32>
    %98 = math.exp %97 : vector<2x8x8xf32>
    %cst_31 = arith.constant dense<0.000000e+00> : vector<2x8xf32>
    %99 = vector.multi_reduction <add>, %98, %cst_31 [2] : vector<2x8x8xf32> to vector<2x8xf32>
    %100 = vector.shape_cast %99 : vector<2x8xf32> to vector<2x8x1xf32>
    %101 = tpu.reciprocal %100 {approx = true} : vector<2x8x1xf32> -> vector<2x8x1xf32>
    %102 = vector.broadcast %101 : vector<2x8x1xf32> to vector<2x8x8xf32>
    %103 = arith.mulf %98, %102 : vector<2x8x8xf32>
    %104 = arith.truncf %103 : vector<2x8x8xf32> to vector<2x8x8xbf16>
    "tpu.trace_start"() <{level = 10 : i32, message = "bqk,bkd->bqd"}> : () -> ()
    %cst_32 = arith.constant dense<0.000000e+00> : vector<2x8x8xf32>
    %105 = tpu.matmul %104, %91, %cst_32 {dimension_numbers = #tpu.dot_dimension_numbers<[2], [1], [1], [2], [0, 0, 0, 1, 1, 2], [0], [0]>} : vector<2x8x8xbf16>, vector<2x8x8xbf16>, vector<2x8x8xf32> -> vector<2x8x8xf32>
    "tpu.trace_stop"() : () -> ()
    %106 = vector.shape_cast %105 : vector<2x8x8xf32> to vector<16x8xf32>
    %107 = arith.truncf %106 : vector<16x8xf32> to vector<16x8xbf16>
    %108 = vector.extract_strided_slice %40 {offsets = [0, 0, 24], sizes = [2, 8, 8], strides = [1, 1, 1]} : vector<2x8x32xbf16> to vector<2x8x8xbf16>
    %109 = vector.extract_strided_slice %43 {offsets = [0, 0, 24], sizes = [2, 8, 8], strides = [1, 1, 1]} : vector<2x8x32xbf16> to vector<2x8x8xbf16>
    %110 = vector.extract_strided_slice %46 {offsets = [0, 0, 24], sizes = [2, 8, 8], strides = [1, 1, 1]} : vector<2x8x32xbf16> to vector<2x8x8xbf16>
    "tpu.trace_start"() <{level = 10 : i32, message = "bqd,bkd->bqk"}> : () -> ()
    %cst_33 = arith.constant dense<0.000000e+00> : vector<2x8x8xf32>
    %111 = tpu.matmul %108, %109, %cst_33 {dimension_numbers = #tpu.dot_dimension_numbers<[2], [2], [1], [1], [0, 0, 0, 1, 1, 1], [0], [0]>} : vector<2x8x8xbf16>, vector<2x8x8xbf16>, vector<2x8x8xf32> -> vector<2x8x8xf32>
    "tpu.trace_stop"() : () -> ()
    %112 = arith.addf %111, %50 : vector<2x8x8xf32>
    %cst_34 = arith.constant dense<0xFF800000> : vector<2x8xf32>
    %113 = vector.multi_reduction <maximumf>, %112, %cst_34 [2] : vector<2x8x8xf32> to vector<2x8xf32>
    %114 = vector.shape_cast %113 : vector<2x8xf32> to vector<2x8x1xf32>
    %115 = vector.broadcast %114 : vector<2x8x1xf32> to vector<2x8x8xf32>
    %116 = arith.subf %112, %115 : vector<2x8x8xf32>
    %117 = math.exp %116 : vector<2x8x8xf32>
    %cst_35 = arith.constant dense<0.000000e+00> : vector<2x8xf32>
    %118 = vector.multi_reduction <add>, %117, %cst_35 [2] : vector<2x8x8xf32> to vector<2x8xf32>
    %119 = vector.shape_cast %118 : vector<2x8xf32> to vector<2x8x1xf32>
    %120 = tpu.reciprocal %119 {approx = true} : vector<2x8x1xf32> -> vector<2x8x1xf32>
    %121 = vector.broadcast %120 : vector<2x8x1xf32> to vector<2x8x8xf32>
    %122 = arith.mulf %117, %121 : vector<2x8x8xf32>
    %123 = arith.truncf %122 : vector<2x8x8xf32> to vector<2x8x8xbf16>
    "tpu.trace_start"() <{level = 10 : i32, message = "bqk,bkd->bqd"}> : () -> ()
    %cst_36 = arith.constant dense<0.000000e+00> : vector<2x8x8xf32>
    %124 = tpu.matmul %123, %110, %cst_36 {dimension_numbers = #tpu.dot_dimension_numbers<[2], [1], [1], [2], [0, 0, 0, 1, 1, 2], [0], [0]>} : vector<2x8x8xbf16>, vector<2x8x8xbf16>, vector<2x8x8xf32> -> vector<2x8x8xf32>
    "tpu.trace_stop"() : () -> ()
    %125 = vector.shape_cast %124 : vector<2x8x8xf32> to vector<16x8xf32>
    %126 = arith.truncf %125 : vector<16x8xf32> to vector<16x8xbf16>
    %127 = tpu.concatenate %69, %88, %107, %126 in 1 : vector<16x8xbf16>, vector<16x8xbf16>, vector<16x8xbf16>, vector<16x8xbf16> -> vector<16x32xbf16>
    %c0_37 = arith.constant 0 : index
    %c0_38 = arith.constant 0 : index
    %c0_39 = arith.constant 0 : index
    %128 = vector.load %arg11[%c0_37, %c0_38, %c0_39] : memref<1x32x32xbf16, #tpu.memory_space<vmem>>, vector<1x32x32xbf16>
    %129 = vector.shape_cast %128 : vector<1x32x32xbf16> to vector<32x32xbf16>
    %cst_40 = arith.constant dense<0.000000e+00> : vector<16x32xf32>
    %130 = tpu.matmul %127, %129, %cst_40 {dimension_numbers = #tpu.dot_dimension_numbers<[1], [0], [0], [1], [0, 0, 1, 1], [], []>} : vector<16x32xbf16>, vector<32x32xbf16>, vector<16x32xf32> -> vector<16x32xf32>
    %c0_41 = arith.constant 0 : index
    %c0_42 = arith.constant 0 : index
    %c0_43 = arith.constant 0 : index
    %131 = vector.load %arg12[%c0_41, %c0_42, %c0_43] : memref<1x1x32xf32, #tpu.memory_space<vmem>>, vector<1x1x32xf32>
    %132 = vector.shape_cast %131 : vector<1x1x32xf32> to vector<1x32xf32>
    %133 = vector.broadcast %132 : vector<1x32xf32> to vector<16x32xf32>
    %134 = arith.addf %130, %133 : vector<16x32xf32>
    %135 = arith.addf %3, %134 : vector<16x32xf32>
    %c0_44 = arith.constant 0 : index
    %c0_45 = arith.constant 0 : index
    %c0_46 = arith.constant 0 : index
    %136 = vector.load %arg13[%c0_44, %c0_45, %c0_46] : memref<1x1x32xf32, #tpu.memory_space<vmem>>, vector<1x1x32xf32>
    %137 = vector.shape_cast %136 : vector<1x1x32xf32> to vector<1x32xf32>
    %c0_47 = arith.constant 0 : index
    %c0_48 = arith.constant 0 : index
    %c0_49 = arith.constant 0 : index
    %138 = vector.load %arg14[%c0_47, %c0_48, %c0_49] : memref<1x1x32xf32, #tpu.memory_space<vmem>>, vector<1x1x32xf32>
    %139 = vector.shape_cast %138 : vector<1x1x32xf32> to vector<1x32xf32>
    %cst_50 = arith.constant dense<0.000000e+00> : vector<16xf32>
    %140 = vector.multi_reduction <add>, %135, %cst_50 [1] : vector<16x32xf32> to vector<16xf32>
    %141 = vector.shape_cast %140 : vector<16xf32> to vector<16x1xf32>
    %cst_51 = arith.constant 3.200000e+01 : f32
    %142 = vector.broadcast %cst_51 : f32 to vector<16x1xf32>
    %143 = arith.divf %141, %142 : vector<16x1xf32>
    %144 = vector.broadcast %143 : vector<16x1xf32> to vector<16x32xf32>
    %145 = arith.subf %135, %144 : vector<16x32xf32>
    %146 = arith.mulf %145, %145 : vector<16x32xf32>
    %cst_52 = arith.constant dense<0.000000e+00> : vector<16xf32>
    %147 = vector.multi_reduction <add>, %146, %cst_52 [1] : vector<16x32xf32> to vector<16xf32>
    %148 = vector.shape_cast %147 : vector<16xf32> to vector<16x1xf32>
    %cst_53 = arith.constant 3.200000e+01 : f32
    %149 = vector.broadcast %cst_53 : f32 to vector<16x1xf32>
    %150 = arith.divf %148, %149 : vector<16x1xf32>
    %151 = vector.broadcast %143 : vector<16x1xf32> to vector<16x32xf32>
    %152 = arith.subf %135, %151 : vector<16x32xf32>
    %cst_54 = arith.constant 9.99999974E-6 : f32
    %153 = vector.broadcast %cst_54 : f32 to vector<16x1xf32>
    %154 = arith.addf %150, %153 : vector<16x1xf32>
    %155 = math.rsqrt %154 : vector<16x1xf32>
    %156 = vector.broadcast %155 : vector<16x1xf32> to vector<16x32xf32>
    %157 = arith.mulf %152, %156 : vector<16x32xf32>
    %158 = vector.broadcast %137 : vector<1x32xf32> to vector<16x32xf32>
    %159 = arith.mulf %157, %158 : vector<16x32xf32>
    %160 = vector.broadcast %139 : vector<1x32xf32> to vector<16x32xf32>
    %161 = arith.addf %159, %160 : vector<16x32xf32>
    %162 = arith.truncf %161 : vector<16x32xf32> to vector<16x32xbf16>
    %c0_55 = arith.constant 0 : index
    %c0_56 = arith.constant 0 : index
    %c0_57 = arith.constant 0 : index
    %163 = vector.load %arg15[%c0_55, %c0_56, %c0_57] : memref<1x32x128xbf16, #tpu.memory_space<vmem>>, vector<1x32x128xbf16>
    %164 = vector.shape_cast %163 : vector<1x32x128xbf16> to vector<32x128xbf16>
    %cst_58 = arith.constant dense<0.000000e+00> : vector<16x128xf32>
    %165 = tpu.matmul %162, %164, %cst_58 {dimension_numbers = #tpu.dot_dimension_numbers<[1], [0], [0], [1], [0, 0, 1, 1], [], []>} : vector<16x32xbf16>, vector<32x128xbf16>, vector<16x128xf32> -> vector<16x128xf32>
    %c0_59 = arith.constant 0 : index
    %c0_60 = arith.constant 0 : index
    %c0_61 = arith.constant 0 : index
    %166 = vector.load %arg16[%c0_59, %c0_60, %c0_61] : memref<1x1x128xf32, #tpu.memory_space<vmem>>, vector<1x1x128xf32>
    %167 = vector.shape_cast %166 : vector<1x1x128xf32> to vector<1x128xf32>
    %168 = vector.broadcast %167 : vector<1x128xf32> to vector<16x128xf32>
    %169 = arith.addf %165, %168 : vector<16x128xf32>
    %cst_62 = arith.constant 1.702000e+00 : f32
    %170 = vector.broadcast %cst_62 : f32 to vector<16x128xf32>
    %171 = arith.mulf %170, %169 : vector<16x128xf32>
    %172 = arith.negf %171 : vector<16x128xf32>
    %173 = math.exp %172 : vector<16x128xf32>
    %cst_63 = arith.constant 1.000000e+00 : f32
    %174 = vector.broadcast %cst_63 : f32 to vector<16x128xf32>
    %175 = arith.addf %174, %173 : vector<16x128xf32>
    %176 = arith.divf %174, %175 : vector<16x128xf32>
    %177 = arith.mulf %169, %176 : vector<16x128xf32>
    %178 = arith.truncf %177 : vector<16x128xf32> to vector<16x128xbf16>
    %c0_64 = arith.constant 0 : index
    %c0_65 = arith.constant 0 : index
    %c0_66 = arith.constant 0 : index
    %179 = vector.load %arg17[%c0_64, %c0_65, %c0_66] : memref<1x128x32xbf16, #tpu.memory_space<vmem>>, vector<1x128x32xbf16>
    %180 = vector.shape_cast %179 : vector<1x128x32xbf16> to vector<128x32xbf16>
    %cst_67 = arith.constant dense<0.000000e+00> : vector<16x32xf32>
    %181 = tpu.matmul %178, %180, %cst_67 {dimension_numbers = #tpu.dot_dimension_numbers<[1], [0], [0], [1], [0, 0, 1, 1], [], []>} : vector<16x128xbf16>, vector<128x32xbf16>, vector<16x32xf32> -> vector<16x32xf32>
    %c0_68 = arith.constant 0 : index
    %c0_69 = arith.constant 0 : index
    %c0_70 = arith.constant 0 : index
    %182 = vector.load %arg18[%c0_68, %c0_69, %c0_70] : memref<1x1x32xf32, #tpu.memory_space<vmem>>, vector<1x1x32xf32>
    %183 = vector.shape_cast %182 : vector<1x1x32xf32> to vector<1x32xf32>
    %184 = vector.broadcast %183 : vector<1x32xf32> to vector<16x32xf32>
    %185 = arith.addf %181, %184 : vector<16x32xf32>
    %186 = arith.addf %135, %185 : vector<16x32xf32>
    %c0_71 = arith.constant 0 : index
    %c0_72 = arith.constant 0 : index
    %187 = vector.load %arg20[%c0_71, %c0_72] : memref<16x32xf32, #tpu.memory_space<vmem>>, vector<16x32xf32>
    tpu.vector_store %arg20[%c0_71, %c0_72], %186 {strides = array<i32>} : memref<16x32xf32, #tpu.memory_space<vmem>>, vector<16x32xf32>,
    %c3_i32 = arith.constant 3 : i32
    %188 = arith.cmpi eq, %arg0, %c3_i32 : i32
    %189 = arith.extui %188 : i1 to i32
    %c0_i32_73 = arith.constant 0 : i32
    %190 = arith.cmpi ne, %189, %c0_i32_73 : i32
    scf.if %190 {
      %191 = vector.shape_cast %186 : vector<16x32xf32> to vector<2x8x32xf32>
      %c0_74 = arith.constant 0 : index
      %c0_75 = arith.constant 0 : index
      %c0_76 = arith.constant 0 : index
      %192 = vector.load %arg3[%c0_74, %c0_75, %c0_76] : memref<2x8x1xf32, #tpu.memory_space<vmem>>, vector<2x8x1xf32>
      %193 = vector.broadcast %192 : vector<2x8x1xf32> to vector<2x8x32xf32>
      %194 = arith.mulf %191, %193 : vector<2x8x32xf32>
      %cst_77 = arith.constant dense<0.000000e+00> : vector<2x32xf32>
      %195 = vector.multi_reduction <add>, %194, %cst_77 [1] : vector<2x8x32xf32> to vector<2x32xf32>
      %c0_78 = arith.constant 0 : index
      %c0_79 = arith.constant 0 : index
      %196 = vector.load %arg4[%c0_78, %c0_79] : memref<1x32xf32, #tpu.memory_space<vmem>>, vector<1x32xf32>
      %c0_80 = arith.constant 0 : index
      %c0_81 = arith.constant 0 : index
      %197 = vector.load %arg5[%c0_80, %c0_81] : memref<1x32xf32, #tpu.memory_space<vmem>>, vector<1x32xf32>
      %cst_82 = arith.constant dense<0.000000e+00> : vector<2xf32>
      %198 = vector.multi_reduction <add>, %195, %cst_82 [1] : vector<2x32xf32> to vector<2xf32>
      %199 = vector.shape_cast %198 : vector<2xf32> to vector<2x1xf32>
      %cst_83 = arith.constant 3.200000e+01 : f32
      %200 = vector.broadcast %cst_83 : f32 to vector<2x1xf32>
      %201 = arith.divf %199, %200 : vector<2x1xf32>
      %202 = vector.broadcast %201 : vector<2x1xf32> to vector<2x32xf32>
      %203 = arith.subf %195, %202 : vector<2x32xf32>
      %204 = arith.mulf %203, %203 : vector<2x32xf32>
      %cst_84 = arith.constant dense<0.000000e+00> : vector<2xf32>
      %205 = vector.multi_reduction <add>, %204, %cst_84 [1] : vector<2x32xf32> to vector<2xf32>
      %206 = vector.shape_cast %205 : vector<2xf32> to vector<2x1xf32>
      %cst_85 = arith.constant 3.200000e+01 : f32
      %207 = vector.broadcast %cst_85 : f32 to vector<2x1xf32>
      %208 = arith.divf %206, %207 : vector<2x1xf32>
      %209 = vector.broadcast %201 : vector<2x1xf32> to vector<2x32xf32>
      %210 = arith.subf %195, %209 : vector<2x32xf32>
      %cst_86 = arith.constant 9.99999974E-6 : f32
      %211 = vector.broadcast %cst_86 : f32 to vector<2x1xf32>
      %212 = arith.addf %208, %211 : vector<2x1xf32>
      %213 = math.rsqrt %212 : vector<2x1xf32>
      %214 = vector.broadcast %213 : vector<2x1xf32> to vector<2x32xf32>
      %215 = arith.mulf %210, %214 : vector<2x32xf32>
      %216 = vector.broadcast %196 : vector<1x32xf32> to vector<2x32xf32>
      %217 = arith.mulf %215, %216 : vector<2x32xf32>
      %218 = vector.broadcast %197 : vector<1x32xf32> to vector<2x32xf32>
      %219 = arith.addf %217, %218 : vector<2x32xf32>
      %c0_87 = arith.constant 0 : index
      %c0_88 = arith.constant 0 : index
      %220 = vector.load %arg6[%c0_87, %c0_88] : memref<32x64xf32, #tpu.memory_space<vmem>>, vector<32x64xf32>
      %cst_89 = arith.constant dense<0.000000e+00> : vector<2x64xf32>
      %221 = tpu.matmul %219, %220, %cst_89 {dimension_numbers = #tpu.dot_dimension_numbers<[1], [0], [0], [1], [0, 0, 1, 1], [], []>} : vector<2x32xf32>, vector<32x64xf32>, vector<2x64xf32> -> vector<2x64xf32>
      %c0_90 = arith.constant 0 : index
      %c0_91 = arith.constant 0 : index
      %222 = vector.load %arg19[%c0_90, %c0_91] : memref<2x64xf32, #tpu.memory_space<vmem>>, vector<2x64xf32>
      tpu.vector_store %arg19[%c0_90, %c0_91], %221 {strides = array<i32>} : memref<2x64xf32, #tpu.memory_space<vmem>>, vector<2x64xf32>,
    } else {
    }
    return
  }
  func.func @transform_0(%arg0: i32) -> (i32, i32, i32) {
    %c0_i32 = arith.constant 0 : i32
    %c0_i32_0 = arith.constant 0 : i32
    %c0_i32_1 = arith.constant 0 : i32
    %c0_i32_2 = arith.constant 0 : i32
    return %c0_i32, %c0_i32_0, %c0_i32_1 : i32, i32, i32
  }
  func.func @transform_1(%arg0: i32) -> (i32, i32) {
    %c0_i32 = arith.constant 0 : i32
    %c0_i32_0 = arith.constant 0 : i32
    %c0_i32_1 = arith.constant 0 : i32
    return %c0_i32, %c0_i32_0 : i32, i32
  }
  func.func @transform_2(%arg0: i32) -> (i32, i32, i32) {
    %c0_i32 = arith.constant 0 : i32
    %c0_i32_0 = arith.constant 0 : i32
    %c0_i32_1 = arith.constant 0 : i32
    %c0_i32_2 = arith.constant 0 : i32
    return %c0_i32, %c0_i32_0, %c0_i32_1 : i32, i32, i32
  }
  func.func @transform_3(%arg0: i32) -> (i32, i32) {
    %c0_i32 = arith.constant 0 : i32
    %c0_i32_0 = arith.constant 0 : i32
    %c0_i32_1 = arith.constant 0 : i32
    return %c0_i32, %c0_i32_0 : i32, i32
  }
  func.func @transform_4(%arg0: i32) -> (i32, i32) {
    %c0_i32 = arith.constant 0 : i32
    %c0_i32_0 = arith.constant 0 : i32
    %c0_i32_1 = arith.constant 0 : i32
    return %c0_i32, %c0_i32_0 : i32, i32
  }
  func.func @transform_5(%arg0: i32) -> (i32, i32) {
    %c0_i32 = arith.constant 0 : i32
    %c0_i32_0 = arith.constant 0 : i32
    %c0_i32_1 = arith.constant 0 : i32
    return %c0_i32, %c0_i32_0 : i32, i32
  }
  func.func @transform_6(%arg0: i32) -> (i32, i32, i32) {
    %c0_i32 = arith.constant 0 : i32
    %c0_i32_0 = arith.constant 0 : i32
    %c0_i32_1 = arith.constant 0 : i32
    return %arg0, %c0_i32, %c0_i32_0 : i32, i32, i32
  }
  func.func @transform_7(%arg0: i32) -> (i32, i32, i32) {
    %c0_i32 = arith.constant 0 : i32
    %c0_i32_0 = arith.constant 0 : i32
    %c0_i32_1 = arith.constant 0 : i32
    return %arg0, %c0_i32, %c0_i32_0 : i32, i32, i32
  }
  func.func @transform_8(%arg0: i32) -> (i32, i32, i32) {
    %c0_i32 = arith.constant 0 : i32
    %c0_i32_0 = arith.constant 0 : i32
    %c0_i32_1 = arith.constant 0 : i32
    return %arg0, %c0_i32, %c0_i32_0 : i32, i32, i32
  }
  func.func @transform_9(%arg0: i32) -> (i32, i32, i32) {
    %c0_i32 = arith.constant 0 : i32
    %c0_i32_0 = arith.constant 0 : i32
    %c0_i32_1 = arith.constant 0 : i32
    return %arg0, %c0_i32, %c0_i32_0 : i32, i32, i32
  }
  func.func @transform_10(%arg0: i32) -> (i32, i32, i32) {
    %c0_i32 = arith.constant 0 : i32
    %c0_i32_0 = arith.constant 0 : i32
    %c0_i32_1 = arith.constant 0 : i32
    return %arg0, %c0_i32, %c0_i32_0 : i32, i32, i32
  }
  func.func @transform_11(%arg0: i32) -> (i32, i32, i32) {
    %c0_i32 = arith.constant 0 : i32
    %c0_i32_0 = arith.constant 0 : i32
    %c0_i32_1 = arith.constant 0 : i32
    return %arg0, %c0_i32, %c0_i32_0 : i32, i32, i32
  }
  func.func @transform_12(%arg0: i32) -> (i32, i32, i32) {
    %c0_i32 = arith.constant 0 : i32
    %c0_i32_0 = arith.constant 0 : i32
    %c0_i32_1 = arith.constant 0 : i32
    return %arg0, %c0_i32, %c0_i32_0 : i32, i32, i32
  }
  func.func @transform_13(%arg0: i32) -> (i32, i32, i32) {
    %c0_i32 = arith.constant 0 : i32
    %c0_i32_0 = arith.constant 0 : i32
    %c0_i32_1 = arith.constant 0 : i32
    return %arg0, %c0_i32, %c0_i32_0 : i32, i32, i32
  }
  func.func @transform_14(%arg0: i32) -> (i32, i32, i32) {
    %c0_i32 = arith.constant 0 : i32
    %c0_i32_0 = arith.constant 0 : i32
    %c0_i32_1 = arith.constant 0 : i32
    return %arg0, %c0_i32, %c0_i32_0 : i32, i32, i32
  }
  func.func @transform_15(%arg0: i32) -> (i32, i32, i32) {
    %c0_i32 = arith.constant 0 : i32
    %c0_i32_0 = arith.constant 0 : i32
    %c0_i32_1 = arith.constant 0 : i32
    return %arg0, %c0_i32, %c0_i32_0 : i32, i32, i32
  }
  func.func @transform_16(%arg0: i32) -> (i32, i32, i32) {
    %c0_i32 = arith.constant 0 : i32
    %c0_i32_0 = arith.constant 0 : i32
    %c0_i32_1 = arith.constant 0 : i32
    return %arg0, %c0_i32, %c0_i32_0 : i32, i32, i32
  }
  func.func @transform_17(%arg0: i32) -> (i32, i32, i32) {
    %c0_i32 = arith.constant 0 : i32
    %c0_i32_0 = arith.constant 0 : i32
    %c0_i32_1 = arith.constant 0 : i32
    return %arg0, %c0_i32, %c0_i32_0 : i32, i32, i32
  }
  func.func @transform_18(%arg0: i32) -> (i32, i32) {
    %c0_i32 = arith.constant 0 : i32
    %c0_i32_0 = arith.constant 0 : i32
    %c0_i32_1 = arith.constant 0 : i32
    return %c0_i32, %c0_i32_0 : i32, i32
  }
}

</mosaic_0001>

<llo_original>
// kernel: tpu_custom_call.1
$region0: #{tpu_custom_call.1}
  #allocation0 [shape = 'u32[]', space=smem, size = 0x4, offset = 0x4, fixed_abs, tag = 'smem constant byte address 0x4 - core index']
  #allocation1 [shape = 'u32[144,128]{1,0:T(1,128)}', space=vmem, size = 0x12000, scoped, tag = 'internal scratch']
  #allocation2 [shape = 'f32[16,32]{1,0:T(8,128)}', space=vmem, size = 0x2000, scoped, tag = 'scratch operand']
  %s0 = inlined_call_operand.vmem [shape: f32[2,8,32], index: 0, kind: input, shape index: {}]
  %s1 = inlined_call_operand.vmem [shape: f32[8,8], index: 1, kind: input, shape index: {}]
  %s2 = inlined_call_operand.vmem [shape: f32[2,8,1], index: 2, kind: input, shape index: {}]
  %s3 = inlined_call_operand.vmem [shape: f32[1,32], index: 3, kind: input, shape index: {}]
  %s4 = inlined_call_operand.vmem [shape: f32[1,32], index: 4, kind: input, shape index: {}]
  %s5 = inlined_call_operand.vmem [shape: f32[32,64], index: 5, kind: input, shape index: {}]
  %s6 = inlined_call_operand.vmem [shape: f32[4,1,32], index: 6, kind: input, shape index: {}]
  %s7 = inlined_call_operand.vmem [shape: f32[4,1,32], index: 7, kind: input, shape index: {}]
  %s8 = inlined_call_operand.vmem [shape: bf16[4,32,96], index: 8, kind: input, shape index: {}]
  %s9 = inlined_call_operand.vmem [shape: f32[4,1,96], index: 9, kind: input, shape index: {}]
  %s10 = inlined_call_operand.vmem [shape: bf16[4,32,32], index: 10, kind: input, shape index: {}]
  %s11 = inlined_call_operand.vmem [shape: f32[4,1,32], index: 11, kind: input, shape index: {}]
  %s12 = inlined_call_operand.vmem [shape: f32[4,1,32], index: 12, kind: input, shape index: {}]
  %s13 = inlined_call_operand.vmem [shape: f32[4,1,32], index: 13, kind: input, shape index: {}]
  %s14 = inlined_call_operand.vmem [shape: bf16[4,32,128], index: 14, kind: input, shape index: {}]
  %s15 = inlined_call_operand.vmem [shape: f32[4,1,128], index: 15, kind: input, shape index: {}]
  %s16 = inlined_call_operand.vmem [shape: bf16[4,128,32], index: 16, kind: input, shape index: {}]
  %s17 = inlined_call_operand.vmem [shape: f32[4,1,32], index: 17, kind: input, shape index: {}]
  %s18 = inlined_call_operand.hbm [shape: f32[2,64], index: 18, kind: output, shape index: {}]
  %s19 = sld [smem:[#allocation0]]
  $region113: #{tpu_custom_call.1} parent=0
    _
  %s21 = ssub.s32 1, %s19
  %s22 = scalar_select 0, %s21, %s19
  $region1: #{tpu_custom_call.1} parent=0
    #allocation3 [shape = 'u8[1024]{0}', space=vmem, size = 0x400, scoped, tag = 'output window, operand 0, single buffered']
    #allocation4 [shape = 's32[2]{0}', space=sflag, size = 0x8, scoped, tag = 'scoped memory for tpu_custom_call.1']
    %23 = vsyncpa [#allocation4], 0
    loop: start=0, step=1, limit=6
    $region2: #{tpu_custom_call.1} parent=1 // loop_pre_header
      _
    $region3: #{tpu_custom_call.1} parent=1 // loop_header
      %s25 = sphi 0, %s29
      %p26 = scmp.ge.s32.totalorder %s25, 6
      %s33 = sphi 0, %s33
      %s35 = sphi 0, %s33
      %s36 = sphi 0, %s35
      %s50 = sphi 0, %s36
      %s54 = sphi 0, %s54
      %s56 = sphi 0, %s54
      %s57 = sphi 0, %s56
      %s71 = sphi 0, %s57
      %s75 = sphi 0, %s75
      %s77 = sphi 0, %s75
      %s78 = sphi 0, %s77
      %s92 = sphi 0, %s78
      %s96 = sphi 0, %s96
      %s98 = sphi 0, %s96
      %s99 = sphi 0, %s98
      %s113 = sphi 0, %s99
      %s117 = sphi 0, %s117
      %s119 = sphi 0, %s117
      %s120 = sphi 0, %s119
      %s134 = sphi 0, %s120
      %s138 = sphi 0, %s138
      %s140 = sphi 0, %s138
      %s141 = sphi 0, %s140
      %s155 = sphi 0, %s141
      %s161 = sphi 0, %s163
      %s164 = sphi 0, %s161
      %s165 = sphi 0, %s164
      %s181 = sphi 0, %s165
      %s187 = sphi 0, %s189
      %s190 = sphi 0, %s187
      %s191 = sphi 0, %s190
      %s207 = sphi 0, %s191
      %s213 = sphi 0, %s215
      %s216 = sphi 0, %s213
      %s217 = sphi 0, %s216
      %s233 = sphi 0, %s217
      %s239 = sphi 0, %s241
      %s242 = sphi 0, %s239
      %s243 = sphi 0, %s242
      %s259 = sphi 0, %s243
      %s265 = sphi 0, %s267
      %s268 = sphi 0, %s265
      %s269 = sphi 0, %s268
      %s285 = sphi 0, %s269
      %s291 = sphi 0, %s293
      %s294 = sphi 0, %s291
      %s295 = sphi 0, %s294
      %s311 = sphi 0, %s295
      %s317 = sphi 0, %s319
      %s320 = sphi 0, %s317
      %s321 = sphi 0, %s320
      %s337 = sphi 0, %s321
      %s343 = sphi 0, %s345
      %s346 = sphi 0, %s343
      %s347 = sphi 0, %s346
      %s363 = sphi 0, %s347
      %s369 = sphi 0, %s371
      %s372 = sphi 0, %s369
      %s373 = sphi 0, %s372
      %s389 = sphi 0, %s373
      %s395 = sphi 0, %s397
      %s398 = sphi 0, %s395
      %s399 = sphi 0, %s398
      %s415 = sphi 0, %s399
      %s421 = sphi 0, %s423
      %s424 = sphi 0, %s421
      %s425 = sphi 0, %s424
      %s441 = sphi 0, %s425
      %s447 = sphi 0, %s449
      %s450 = sphi 0, %s447
      %s451 = sphi 0, %s450
      %s467 = sphi 0, %s451
      %s471 = sphi 0, %s471
      %s473 = sphi 0, %s471
      %s474 = sphi 0, %s473
      %s488 = sphi 0, %s474
    $region4: #{tpu_custom_call.1} parent=1 // loop_header_branch
      %28 = sbr.rel (%p26) target = $region8
    $region5: #{tpu_custom_call.1} parent=1 // loop_body
      %s30 = ssub.s32 %s25, 1
      %s31 = ssub.s32 %s25, 2
      %s32 = sadd.s32 %s25, 1
      %s34 = sadd.s32 %s33, 1
      %p37 = scmp.eq.s32.totalorder %s25, 3
      %p38 = scmp.ne.s32.totalorder %s33, %s35
      %p39 = scmp.eq.s32.totalorder %s25, 0
      %p40 = por %p38, %p39
      %p41 = scmp.ne.s32.totalorder %s33, %s35
      %p42 = scmp.eq.s32.totalorder %s30, 3
      %p43 = por %p41, %p42
      %p44 = scmp.ne.s32.totalorder %s35, %s36
      %p45 = scmp.eq.s32.totalorder %s30, 0
      %p46 = por %p44, %p45
      %p47 = scmp.ne.s32.totalorder %s35, %s36
      %p48 = scmp.eq.s32.totalorder %s31, 3
      %p49 = por %p47, %p48
      %p51 = scmp.ne.s32.totalorder %s36, %s50
      %p52 = scmp.eq.s32.totalorder %s31, 0
      %p53 = por %p51, %p52
      %s55 = sadd.s32 %s54, 1
      %p58 = scmp.eq.s32.totalorder %s25, 3
      %p59 = scmp.ne.s32.totalorder %s54, %s56
      %p60 = scmp.eq.s32.totalorder %s25, 0
      %p61 = por %p59, %p60
      %p62 = scmp.ne.s32.totalorder %s54, %s56
      %p63 = scmp.eq.s32.totalorder %s30, 3
      %p64 = por %p62, %p63
      %p65 = scmp.ne.s32.totalorder %s56, %s57
      %p66 = scmp.eq.s32.totalorder %s30, 0
      %p67 = por %p65, %p66
      %p68 = scmp.ne.s32.totalorder %s56, %s57
      %p69 = scmp.eq.s32.totalorder %s31, 3
      %p70 = por %p68, %p69
      %p72 = scmp.ne.s32.totalorder %s57, %s71
      %p73 = scmp.eq.s32.totalorder %s31, 0
      %p74 = por %p72, %p73
      %s76 = sadd.s32 %s75, 1
      %p79 = scmp.eq.s32.totalorder %s25, 3
      %p80 = scmp.ne.s32.totalorder %s75, %s77
      %p81 = scmp.eq.s32.totalorder %s25, 0
      %p82 = por %p80, %p81
      %p83 = scmp.ne.s32.totalorder %s75, %s77
      %p84 = scmp.eq.s32.totalorder %s30, 3
      %p85 = por %p83, %p84
      %p86 = scmp.ne.s32.totalorder %s77, %s78
      %p87 = scmp.eq.s32.totalorder %s30, 0
      %p88 = por %p86, %p87
      %p89 = scmp.ne.s32.totalorder %s77, %s78
      %p90 = scmp.eq.s32.totalorder %s31, 3
      %p91 = por %p89, %p90
      %p93 = scmp.ne.s32.totalorder %s78, %s92
      %p94 = scmp.eq.s32.totalorder %s31, 0
      %p95 = por %p93, %p94
      %s97 = sadd.s32 %s96, 1
      %p100 = scmp.eq.s32.totalorder %s25, 3
      %p101 = scmp.ne.s32.totalorder %s96, %s98
      %p102 = scmp.eq.s32.totalorder %s25, 0
      %p103 = por %p101, %p102
      %p104 = scmp.ne.s32.totalorder %s96, %s98
      %p105 = scmp.eq.s32.totalorder %s30, 3
      %p106 = por %p104, %p105
      %p107 = scmp.ne.s32.totalorder %s98, %s99
      %p108 = scmp.eq.s32.totalorder %s30, 0
      %p109 = por %p107, %p108
      %p110 = scmp.ne.s32.totalorder %s98, %s99
      %p111 = scmp.eq.s32.totalorder %s31, 3
      %p112 = por %p110, %p111
      %p114 = scmp.ne.s32.totalorder %s99, %s113
      %p115 = scmp.eq.s32.totalorder %s31, 0
      %p116 = por %p114, %p115
      %s118 = sadd.s32 %s117, 1
      %p121 = scmp.eq.s32.totalorder %s25, 3
      %p122 = scmp.ne.s32.totalorder %s117, %s119
      %p123 = scmp.eq.s32.totalorder %s25, 0
      %p124 = por %p122, %p123
      %p125 = scmp.ne.s32.totalorder %s117, %s119
      %p126 = scmp.eq.s32.totalorder %s30, 3
      %p127 = por %p125, %p126
      %p128 = scmp.ne.s32.totalorder %s119, %s120
      %p129 = scmp.eq.s32.totalorder %s30, 0
      %p130 = por %p128, %p129
      %p131 = scmp.ne.s32.totalorder %s119, %s120
      %p132 = scmp.eq.s32.totalorder %s31, 3
      %p133 = por %p131, %p132
      %p135 = scmp.ne.s32.totalorder %s120, %s134
      %p136 = scmp.eq.s32.totalorder %s31, 0
      %p137 = por %p135, %p136
      %s139 = sadd.s32 %s138, 1
      %p142 = scmp.eq.s32.totalorder %s25, 3
      %p143 = scmp.ne.s32.totalorder %s138, %s140
      %p144 = scmp.eq.s32.totalorder %s25, 0
      %p145 = por %p143, %p144
      %p146 = scmp.ne.s32.totalorder %s138, %s140
      %p147 = scmp.eq.s32.totalorder %s30, 3
      %p148 = por %p146, %p147
      %p149 = scmp.ne.s32.totalorder %s140, %s141
      %p150 = scmp.eq.s32.totalorder %s30, 0
      %p151 = por %p149, %p150
      %p152 = scmp.ne.s32.totalorder %s140, %s141
      %p153 = scmp.eq.s32.totalorder %s31, 3
      %p154 = por %p152, %p153
      %p156 = scmp.ne.s32.totalorder %s141, %s155
      %p157 = scmp.eq.s32.totalorder %s31, 0
      %p158 = por %p156, %p157
      %s159 = ssub.s32 %s25, %s32
      %p160 = scmp.eq.s32.totalorder %s159, 0
      %s162 = sadd.s32 %s161, 1
      %s163 = scalar_select %p160, %s161, %s162
      %p166 = pneg %p160
      %p167 = scmp.eq.s32.totalorder %s25, 3
      %p168 = por %p166, %p167
      %p169 = scmp.ne.s32.totalorder %s161, %s164
      %p170 = scmp.eq.s32.totalorder %s25, 0
      %p171 = por %p169, %p170
      %p172 = scmp.ne.s32.totalorder %s161, %s164
      %p173 = scmp.eq.s32.totalorder %s30, 3
      %p174 = por %p172, %p173
      %p175 = scmp.ne.s32.totalorder %s164, %s165
      %p176 = scmp.eq.s32.totalorder %s30, 0
      %p177 = por %p175, %p176
      %p178 = scmp.ne.s32.totalorder %s164, %s165
      %p179 = scmp.eq.s32.totalorder %s31, 3
      %p180 = por %p178, %p179
      %p182 = scmp.ne.s32.totalorder %s165, %s181
      %p183 = scmp.eq.s32.totalorder %s31, 0
      %p184 = por %p182, %p183
      %s185 = ssub.s32 %s25, %s32
      %p186 = scmp.eq.s32.totalorder %s185, 0
      %s188 = sadd.s32 %s187, 1
      %s189 = scalar_select %p186, %s187, %s188
      %p192 = pneg %p186
      %p193 = scmp.eq.s32.totalorder %s25, 3
      %p194 = por %p192, %p193
      %p195 = scmp.ne.s32.totalorder %s187, %s190
      %p196 = scmp.eq.s32.totalorder %s25, 0
      %p197 = por %p195, %p196
      %p198 = scmp.ne.s32.totalorder %s187, %s190
      %p199 = scmp.eq.s32.totalorder %s30, 3
      %p200 = por %p198, %p199
      %p201 = scmp.ne.s32.totalorder %s190, %s191
      %p202 = scmp.eq.s32.totalorder %s30, 0
      %p203 = por %p201, %p202
      %p204 = scmp.ne.s32.totalorder %s190, %s191
      %p205 = scmp.eq.s32.totalorder %s31, 3
      %p206 = por %p204, %p205
      %p208 = scmp.ne.s32.totalorder %s191, %s207
      %p209 = scmp.eq.s32.totalorder %s31, 0
      %p210 = por %p208, %p209
      %s211 = ssub.s32 %s25, %s32
      %p212 = scmp.eq.s32.totalorder %s211, 0
      %s214 = sadd.s32 %s213, 1
      %s215 = scalar_select %p212, %s213, %s214
      %p218 = pneg %p212
      %p219 = scmp.eq.s32.totalorder %s25, 3
      %p220 = por %p218, %p219
      %p221 = scmp.ne.s32.totalorder %s213, %s216
      %p222 = scmp.eq.s32.totalorder %s25, 0
      %p223 = por %p221, %p222
      %p224 = scmp.ne.s32.totalorder %s213, %s216
      %p225 = scmp.eq.s32.totalorder %s30, 3
      %p226 = por %p224, %p225
      %p227 = scmp.ne.s32.totalorder %s216, %s217
      %p228 = scmp.eq.s32.totalorder %s30, 0
      %p229 = por %p227, %p228
      %p230 = scmp.ne.s32.totalorder %s216, %s217
      %p231 = scmp.eq.s32.totalorder %s31, 3
      %p232 = por %p230, %p231
      %p234 = scmp.ne.s32.totalorder %s217, %s233
      %p235 = scmp.eq.s32.totalorder %s31, 0
      %p236 = por %p234, %p235
      %s237 = ssub.s32 %s25, %s32
      %p238 = scmp.eq.s32.totalorder %s237, 0
      %s240 = sadd.s32 %s239, 1
      %s241 = scalar_select %p238, %s239, %s240
      %p244 = pneg %p238
      %p245 = scmp.eq.s32.totalorder %s25, 3
      %p246 = por %p244, %p245
      %p247 = scmp.ne.s32.totalorder %s239, %s242
      %p248 = scmp.eq.s32.totalorder %s25, 0
      %p249 = por %p247, %p248
      %p250 = scmp.ne.s32.totalorder %s239, %s242
      %p251 = scmp.eq.s32.totalorder %s30, 3
      %p252 = por %p250, %p251
      %p253 = scmp.ne.s32.totalorder %s242, %s243
      %p254 = scmp.eq.s32.totalorder %s30, 0
      %p255 = por %p253, %p254
      %p256 = scmp.ne.s32.totalorder %s242, %s243
      %p257 = scmp.eq.s32.totalorder %s31, 3
      %p258 = por %p256, %p257
      %p260 = scmp.ne.s32.totalorder %s243, %s259
      %p261 = scmp.eq.s32.totalorder %s31, 0
      %p262 = por %p260, %p261
      %s263 = ssub.s32 %s25, %s32
      %p264 = scmp.eq.s32.totalorder %s263, 0
      %s266 = sadd.s32 %s265, 1
      %s267 = scalar_select %p264, %s265, %s266
      %p270 = pneg %p264
      %p271 = scmp.eq.s32.totalorder %s25, 3
      %p272 = por %p270, %p271
      %p273 = scmp.ne.s32.totalorder %s265, %s268
      %p274 = scmp.eq.s32.totalorder %s25, 0
      %p275 = por %p273, %p274
      %p276 = scmp.ne.s32.totalorder %s265, %s268
      %p277 = scmp.eq.s32.totalorder %s30, 3
      %p278 = por %p276, %p277
      %p279 = scmp.ne.s32.totalorder %s268, %s269
      %p280 = scmp.eq.s32.totalorder %s30, 0
      %p281 = por %p279, %p280
      %p282 = scmp.ne.s32.totalorder %s268, %s269
      %p283 = scmp.eq.s32.totalorder %s31, 3
      %p284 = por %p282, %p283
      %p286 = scmp.ne.s32.totalorder %s269, %s285
      %p287 = scmp.eq.s32.totalorder %s31, 0
      %p288 = por %p286, %p287
      %s289 = ssub.s32 %s25, %s32
      %p290 = scmp.eq.s32.totalorder %s289, 0
      %s292 = sadd.s32 %s291, 1
      %s293 = scalar_select %p290, %s291, %s292
      %p296 = pneg %p290
      %p297 = scmp.eq.s32.totalorder %s25, 3
      %p298 = por %p296, %p297
      %p299 = scmp.ne.s32.totalorder %s291, %s294
      %p300 = scmp.eq.s32.totalorder %s25, 0
      %p301 = por %p299, %p300
      %p302 = scmp.ne.s32.totalorder %s291, %s294
      %p303 = scmp.eq.s32.totalorder %s30, 3
      %p304 = por %p302, %p303
      %p305 = scmp.ne.s32.totalorder %s294, %s295
      %p306 = scmp.eq.s32.totalorder %s30, 0
      %p307 = por %p305, %p306
      %p308 = scmp.ne.s32.totalorder %s294, %s295
      %p309 = scmp.eq.s32.totalorder %s31, 3
      %p310 = por %p308, %p309
      %p312 = scmp.ne.s32.totalorder %s295, %s311
      %p313 = scmp.eq.s32.totalorder %s31, 0
      %p314 = por %p312, %p313
      %s315 = ssub.s32 %s25, %s32
      %p316 = scmp.eq.s32.totalorder %s315, 0
      %s318 = sadd.s32 %s317, 1
      %s319 = scalar_select %p316, %s317, %s318
      %p322 = pneg %p316
      %p323 = scmp.eq.s32.totalorder %s25, 3
      %p324 = por %p322, %p323
      %p325 = scmp.ne.s32.totalorder %s317, %s320
      %p326 = scmp.eq.s32.totalorder %s25, 0
      %p327 = por %p325, %p326
      %p328 = scmp.ne.s32.totalorder %s317, %s320
      %p329 = scmp.eq.s32.totalorder %s30, 3
      %p330 = por %p328, %p329
      %p331 = scmp.ne.s32.totalorder %s320, %s321
      %p332 = scmp.eq.s32.totalorder %s30, 0
      %p333 = por %p331, %p332
      %p334 = scmp.ne.s32.totalorder %s320, %s321
      %p335 = scmp.eq.s32.totalorder %s31, 3
      %p336 = por %p334, %p335
      %p338 = scmp.ne.s32.totalorder %s321, %s337
      %p339 = scmp.eq.s32.totalorder %s31, 0
      %p340 = por %p338, %p339
      %s341 = ssub.s32 %s25, %s32
      %p342 = scmp.eq.s32.totalorder %s341, 0
      %s344 = sadd.s32 %s343, 1
      %s345 = scalar_select %p342, %s343, %s344
      %p348 = pneg %p342
      %p349 = scmp.eq.s32.totalorder %s25, 3
      %p350 = por %p348, %p349
      %p351 = scmp.ne.s32.totalorder %s343, %s346
      %p352 = scmp.eq.s32.totalorder %s25, 0
      %p353 = por %p351, %p352
      %p354 = scmp.ne.s32.totalorder %s343, %s346
      %p355 = scmp.eq.s32.totalorder %s30, 3
      %p356 = por %p354, %p355
      %p357 = scmp.ne.s32.totalorder %s346, %s347
      %p358 = scmp.eq.s32.totalorder %s30, 0
      %p359 = por %p357, %p358
      %p360 = scmp.ne.s32.totalorder %s346, %s347
      %p361 = scmp.eq.s32.totalorder %s31, 3
      %p362 = por %p360, %p361
      %p364 = scmp.ne.s32.totalorder %s347, %s363
      %p365 = scmp.eq.s32.totalorder %s31, 0
      %p366 = por %p364, %p365
      %s367 = ssub.s32 %s25, %s32
      %p368 = scmp.eq.s32.totalorder %s367, 0
      %s370 = sadd.s32 %s369, 1
      %s371 = scalar_select %p368, %s369, %s370
      %p374 = pneg %p368
      %p375 = scmp.eq.s32.totalorder %s25, 3
      %p376 = por %p374, %p375
      %p377 = scmp.ne.s32.totalorder %s369, %s372
      %p378 = scmp.eq.s32.totalorder %s25, 0
      %p379 = por %p377, %p378
      %p380 = scmp.ne.s32.totalorder %s369, %s372
      %p381 = scmp.eq.s32.totalorder %s30, 3
      %p382 = por %p380, %p381
      %p383 = scmp.ne.s32.totalorder %s372, %s373
      %p384 = scmp.eq.s32.totalorder %s30, 0
      %p385 = por %p383, %p384
      %p386 = scmp.ne.s32.totalorder %s372, %s373
      %p387 = scmp.eq.s32.totalorder %s31, 3
      %p388 = por %p386, %p387
      %p390 = scmp.ne.s32.totalorder %s373, %s389
      %p391 = scmp.eq.s32.totalorder %s31, 0
      %p392 = por %p390, %p391
      %s393 = ssub.s32 %s25, %s32
      %p394 = scmp.eq.s32.totalorder %s393, 0
      %s396 = sadd.s32 %s395, 1
      %s397 = scalar_select %p394, %s395, %s396
      %p400 = pneg %p394
      %p401 = scmp.eq.s32.totalorder %s25, 3
      %p402 = por %p400, %p401
      %p403 = scmp.ne.s32.totalorder %s395, %s398
      %p404 = scmp.eq.s32.totalorder %s25, 0
      %p405 = por %p403, %p404
      %p406 = scmp.ne.s32.totalorder %s395, %s398
      %p407 = scmp.eq.s32.totalorder %s30, 3
      %p408 = por %p406, %p407
      %p409 = scmp.ne.s32.totalorder %s398, %s399
      %p410 = scmp.eq.s32.totalorder %s30, 0
      %p411 = por %p409, %p410
      %p412 = scmp.ne.s32.totalorder %s398, %s399
      %p413 = scmp.eq.s32.totalorder %s31, 3
      %p414 = por %p412, %p413
      %p416 = scmp.ne.s32.totalorder %s399, %s415
      %p417 = scmp.eq.s32.totalorder %s31, 0
      %p418 = por %p416, %p417
      %s419 = ssub.s32 %s25, %s32
      %p420 = scmp.eq.s32.totalorder %s419, 0
      %s422 = sadd.s32 %s421, 1
      %s423 = scalar_select %p420, %s421, %s422
      %p426 = pneg %p420
      %p427 = scmp.eq.s32.totalorder %s25, 3
      %p428 = por %p426, %p427
      %p429 = scmp.ne.s32.totalorder %s421, %s424
      %p430 = scmp.eq.s32.totalorder %s25, 0
      %p431 = por %p429, %p430
      %p432 = scmp.ne.s32.totalorder %s421, %s424
      %p433 = scmp.eq.s32.totalorder %s30, 3
      %p434 = por %p432, %p433
      %p435 = scmp.ne.s32.totalorder %s424, %s425
      %p436 = scmp.eq.s32.totalorder %s30, 0
      %p437 = por %p435, %p436
      %p438 = scmp.ne.s32.totalorder %s424, %s425
      %p439 = scmp.eq.s32.totalorder %s31, 3
      %p440 = por %p438, %p439
      %p442 = scmp.ne.s32.totalorder %s425, %s441
      %p443 = scmp.eq.s32.totalorder %s31, 0
      %p444 = por %p442, %p443
      %s445 = ssub.s32 %s25, %s32
      %p446 = scmp.eq.s32.totalorder %s445, 0
      %s448 = sadd.s32 %s447, 1
      %s449 = scalar_select %p446, %s447, %s448
      %p452 = pneg %p446
      %p453 = scmp.eq.s32.totalorder %s25, 3
      %p454 = por %p452, %p453
      %p455 = scmp.ne.s32.totalorder %s447, %s450
      %p456 = scmp.eq.s32.totalorder %s25, 0
      %p457 = por %p455, %p456
      %p458 = scmp.ne.s32.totalorder %s447, %s450
      %p459 = scmp.eq.s32.totalorder %s30, 3
      %p460 = por %p458, %p459
      %p461 = scmp.ne.s32.totalorder %s450, %s451
      %p462 = scmp.eq.s32.totalorder %s30, 0
      %p463 = por %p461, %p462
      %p464 = scmp.ne.s32.totalorder %s450, %s451
      %p465 = scmp.eq.s32.totalorder %s31, 3
      %p466 = por %p464, %p465
      %p468 = scmp.ne.s32.totalorder %s451, %s467
      %p469 = scmp.eq.s32.totalorder %s31, 0
      %p470 = por %p468, %p469
      %s472 = sadd.s32 %s471, 1
      %p475 = scmp.eq.s32.totalorder %s25, 3
      %p476 = scmp.ne.s32.totalorder %s471, %s473
      %p477 = scmp.eq.s32.totalorder %s25, 0
      %p478 = por %p476, %p477
      %p479 = scmp.ne.s32.totalorder %s471, %s473
      %p480 = scmp.eq.s32.totalorder %s30, 3
      %p481 = por %p479, %p480
      %p482 = scmp.ne.s32.totalorder %s473, %s474
      %p483 = scmp.eq.s32.totalorder %s30, 0
      %p484 = por %p482, %p483
      %p485 = scmp.ne.s32.totalorder %s473, %s474
      %p486 = scmp.eq.s32.totalorder %s31, 3
      %p487 = por %p485, %p486
      %p489 = scmp.ne.s32.totalorder %s474, %s488
      %p490 = scmp.eq.s32.totalorder %s31, 0
      %p491 = por %p489, %p490
      %p492 = scmp.le.s32.totalorder 1, %s25
      %p493 = scmp.lt.s32.totalorder %s25, 5
      %p494 = pnand %p492, %p493
      %p495 = pneg %p494
      // Predicated region
      $region9: #{tpu_custom_call.1} parent=5 // pred_check
        _
      $region10: #{tpu_custom_call.1} parent=5 // pred_check_branch
        %497 = sbr.rel (%p494) target = $region12
      $region11: #{tpu_custom_call.1} parent=5 // pred_region
        %s498 = ssub.s32 %s25, 1
        // Predicated region
        $region13: #{tpu_custom_call.1} parent=11 // pred_check
          %p499 = pneg %p46
        $region14: #{tpu_custom_call.1} parent=11 // pred_check_branch
          %501 = sbr.rel (%p499) target = $region16
        $region15: #{tpu_custom_call.1} parent=11 // pred_region
          _
        $region16: #{tpu_custom_call.1} parent=11 // pred_fallthru
          _
        // Predicated region
        $region17: #{tpu_custom_call.1} parent=11 // pred_check
          %p502 = pneg %p67
        $region18: #{tpu_custom_call.1} parent=11 // pred_check_branch
          %504 = sbr.rel (%p502) target = $region20
        $region19: #{tpu_custom_call.1} parent=11 // pred_region
          _
        $region20: #{tpu_custom_call.1} parent=11 // pred_fallthru
          _
        // Predicated region
        $region21: #{tpu_custom_call.1} parent=11 // pred_check
          %p505 = pneg %p88
        $region22: #{tpu_custom_call.1} parent=11 // pred_check_branch
          %507 = sbr.rel (%p505) target = $region24
        $region23: #{tpu_custom_call.1} parent=11 // pred_region
          _
        $region24: #{tpu_custom_call.1} parent=11 // pred_fallthru
          _
        // Predicated region
        $region25: #{tpu_custom_call.1} parent=11 // pred_check
          %p508 = pneg %p109
        $region26: #{tpu_custom_call.1} parent=11 // pred_check_branch
          %510 = sbr.rel (%p508) target = $region28
        $region27: #{tpu_custom_call.1} parent=11 // pred_region
          _
        $region28: #{tpu_custom_call.1} parent=11 // pred_fallthru
          _
        // Predicated region
        $region29: #{tpu_custom_call.1} parent=11 // pred_check
          %p511 = pneg %p130
        $region30: #{tpu_custom_call.1} parent=11 // pred_check_branch
          %513 = sbr.rel (%p511) target = $region32
        $region31: #{tpu_custom_call.1} parent=11 // pred_region
          _
        $region32: #{tpu_custom_call.1} parent=11 // pred_fallthru
          _
        // Predicated region
        $region33: #{tpu_custom_call.1} parent=11 // pred_check
          %p514 = pneg %p151
        $region34: #{tpu_custom_call.1} parent=11 // pred_check_branch
          %516 = sbr.rel (%p514) target = $region36
        $region35: #{tpu_custom_call.1} parent=11 // pred_region
          _
        $region36: #{tpu_custom_call.1} parent=11 // pred_fallthru
          _
      $region12: #{tpu_custom_call.1} parent=5 // pred_fallthru
        _
      %p517 = scmp.lt.s32.totalorder %s25, 4
      // Predicated region
      $region37: #{tpu_custom_call.1} parent=5 // pred_check
        %p518 = pneg %p517
      $region38: #{tpu_custom_call.1} parent=5 // pred_check_branch
        %520 = sbr.rel (%p518) target = $region40
      $region39: #{tpu_custom_call.1} parent=5 // pred_region
        // Predicated region
        $region41: #{tpu_custom_call.1} parent=39 // pred_check
          %p521 = pneg %p171
        $region42: #{tpu_custom_call.1} parent=39 // pred_check_branch
          %523 = sbr.rel (%p521) target = $region44
        $region43: #{tpu_custom_call.1} parent=39 // pred_region
          %p524 = scmp.lt.s32.totalorder %s25, 3
          %s525 = scalar_select %p524, %s25, 3
          %s526 = scalar_lea.vmem %s6, %s525
        $region44: #{tpu_custom_call.1} parent=39 // pred_fallthru
          _
        // Predicated region
        $region45: #{tpu_custom_call.1} parent=39 // pred_check
          %p527 = pneg %p197
        $region46: #{tpu_custom_call.1} parent=39 // pred_check_branch
          %529 = sbr.rel (%p527) target = $region48
        $region47: #{tpu_custom_call.1} parent=39 // pred_region
          %p530 = scmp.lt.s32.totalorder %s25, 3
          %s531 = scalar_select %p530, %s25, 3
          %s532 = scalar_lea.vmem %s7, %s531
        $region48: #{tpu_custom_call.1} parent=39 // pred_fallthru
          _
        // Predicated region
        $region49: #{tpu_custom_call.1} parent=39 // pred_check
          %p533 = pneg %p223
        $region50: #{tpu_custom_call.1} parent=39 // pred_check_branch
          %535 = sbr.rel (%p533) target = $region52
        $region51: #{tpu_custom_call.1} parent=39 // pred_region
          %p536 = scmp.lt.s32.totalorder %s25, 3
          %s537 = scalar_select %p536, %s25, 3
          %s538 = smul.addr %s537, 4
          %s539 = smul.addr %s538, 4
          %s540 = scalar_lea.vmem %s8, %s539
        $region52: #{tpu_custom_call.1} parent=39 // pred_fallthru
          _
        // Predicated region
        $region53: #{tpu_custom_call.1} parent=39 // pred_check
          %p541 = pneg %p249
        $region54: #{tpu_custom_call.1} parent=39 // pred_check_branch
          %543 = sbr.rel (%p541) target = $region56
        $region55: #{tpu_custom_call.1} parent=39 // pred_region
          %p544 = scmp.lt.s32.totalorder %s25, 3
          %s545 = scalar_select %p544, %s25, 3
          %s546 = scalar_lea.vmem %s9, %s545
        $region56: #{tpu_custom_call.1} parent=39 // pred_fallthru
          _
        // Predicated region
        $region57: #{tpu_custom_call.1} parent=39 // pred_check
          %p547 = pneg %p275
        $region58: #{tpu_custom_call.1} parent=39 // pred_check_branch
          %549 = sbr.rel (%p547) target = $region60
        $region59: #{tpu_custom_call.1} parent=39 // pred_region
          %p550 = scmp.lt.s32.totalorder %s25, 3
          %s551 = scalar_select %p550, %s25, 3
          %s552 = smul.addr %s551, 4
          %s553 = smul.addr %s552, 4
          %s554 = scalar_lea.vmem %s10, %s553
        $region60: #{tpu_custom_call.1} parent=39 // pred_fallthru
          _
        // Predicated region
        $region61: #{tpu_custom_call.1} parent=39 // pred_check
          %p555 = pneg %p301
        $region62: #{tpu_custom_call.1} parent=39 // pred_check_branch
          %557 = sbr.rel (%p555) target = $region64
        $region63: #{tpu_custom_call.1} parent=39 // pred_region
          %p558 = scmp.lt.s32.totalorder %s25, 3
          %s559 = scalar_select %p558, %s25, 3
          %s560 = scalar_lea.vmem %s11, %s559
        $region64: #{tpu_custom_call.1} parent=39 // pred_fallthru
          _
        // Predicated region
        $region65: #{tpu_custom_call.1} parent=39 // pred_check
          %p561 = pneg %p327
        $region66: #{tpu_custom_call.1} parent=39 // pred_check_branch
          %563 = sbr.rel (%p561) target = $region68
        $region67: #{tpu_custom_call.1} parent=39 // pred_region
          %p564 = scmp.lt.s32.totalorder %s25, 3
          %s565 = scalar_select %p564, %s25, 3
          %s566 = scalar_lea.vmem %s12, %s565
        $region68: #{tpu_custom_call.1} parent=39 // pred_fallthru
          _
        // Predicated region
        $region69: #{tpu_custom_call.1} parent=39 // pred_check
          %p567 = pneg %p353
        $region70: #{tpu_custom_call.1} parent=39 // pred_check_branch
          %569 = sbr.rel (%p567) target = $region72
        $region71: #{tpu_custom_call.1} parent=39 // pred_region
          %p570 = scmp.lt.s32.totalorder %s25, 3
          %s571 = scalar_select %p570, %s25, 3
          %s572 = scalar_lea.vmem %s13, %s571
        $region72: #{tpu_custom_call.1} parent=39 // pred_fallthru
          _
        // Predicated region
        $region73: #{tpu_custom_call.1} parent=39 // pred_check
          %p573 = pneg %p379
        $region74: #{tpu_custom_call.1} parent=39 // pred_check_branch
          %575 = sbr.rel (%p573) target = $region76
        $region75: #{tpu_custom_call.1} parent=39 // pred_region
          %p576 = scmp.lt.s32.totalorder %s25, 3
          %s577 = scalar_select %p576, %s25, 3
          %s578 = smul.addr %s577, 4
          %s579 = smul.addr %s578, 4
          %s580 = scalar_lea.vmem %s14, %s579
        $region76: #{tpu_custom_call.1} parent=39 // pred_fallthru
          _
        // Predicated region
        $region77: #{tpu_custom_call.1} parent=39 // pred_check
          %p581 = pneg %p405
        $region78: #{tpu_custom_call.1} parent=39 // pred_check_branch
          %583 = sbr.rel (%p581) target = $region80
        $region79: #{tpu_custom_call.1} parent=39 // pred_region
          %p584 = scmp.lt.s32.totalorder %s25, 3
          %s585 = scalar_select %p584, %s25, 3
          %s586 = scalar_lea.vmem %s15, %s585
        $region80: #{tpu_custom_call.1} parent=39 // pred_fallthru
          _
        // Predicated region
        $region81: #{tpu_custom_call.1} parent=39 // pred_check
          %p587 = pneg %p431
        $region82: #{tpu_custom_call.1} parent=39 // pred_check_branch
          %589 = sbr.rel (%p587) target = $region84
        $region83: #{tpu_custom_call.1} parent=39 // pred_region
          %p590 = scmp.lt.s32.totalorder %s25, 3
          %s591 = scalar_select %p590, %s25, 3
          %s592 = smul.addr %s591, 16
          %s593 = smul.addr %s592, 4
          %s594 = scalar_lea.vmem %s16, %s593
        $region84: #{tpu_custom_call.1} parent=39 // pred_fallthru
          _
        // Predicated region
        $region85: #{tpu_custom_call.1} parent=39 // pred_check
          %p595 = pneg %p457
        $region86: #{tpu_custom_call.1} parent=39 // pred_check_branch
          %597 = sbr.rel (%p595) target = $region88
        $region87: #{tpu_custom_call.1} parent=39 // pred_region
          %p598 = scmp.lt.s32.totalorder %s25, 3
          %s599 = scalar_select %p598, %s25, 3
          %s600 = scalar_lea.vmem %s17, %s599
        $region88: #{tpu_custom_call.1} parent=39 // pred_fallthru
          _
      $region40: #{tpu_custom_call.1} parent=5 // pred_fallthru
        _
      %p601 = scmp.le.s32.totalorder 1, %s25
      %p602 = scmp.lt.s32.totalorder %s25, 5
      %p603 = pnand %p601, %p602
      %p604 = pneg %p603
      // Predicated region
      $region89: #{tpu_custom_call.1} parent=5 // pred_check
        _
      $region90: #{tpu_custom_call.1} parent=5 // pred_check_branch
        %606 = sbr.rel (%p603) target = $region92
      $region91: #{tpu_custom_call.1} parent=5 // pred_region
        %s607 = ssub.s32 %s25, 1
        %p608 = pneg %p46
        %p609 = pneg %p43
        %p610 = pneg %p67
        %p611 = pneg %p64
        %p612 = pneg %p88
        %p613 = pneg %p85
        %p614 = pneg %p109
        %p615 = pneg %p106
        %p616 = pneg %p130
        %p617 = pneg %p127
        %p618 = pneg %p151
        %p619 = pneg %p148
        %p620 = scmp.lt.s32.totalorder %s30, 3
        %s621 = scalar_select %p620, %s30, 3
        %s622 = scalar_lea.vmem %s6, %s621
        %p623 = pneg %p177
        %p624 = pneg %p174
        %p625 = scmp.lt.s32.totalorder %s30, 3
        %s626 = scalar_select %p625, %s30, 3
        %s627 = scalar_lea.vmem %s7, %s626
        %p628 = pneg %p203
        %p629 = pneg %p200
        %p630 = scmp.lt.s32.totalorder %s30, 3
        %s631 = scalar_select %p630, %s30, 3
        %s632 = smul.addr %s631, 4
        %s633 = smul.addr %s632, 4
        %s634 = scalar_lea.vmem %s8, %s633
        %p635 = pneg %p229
        %p636 = pneg %p226
        %p637 = scmp.lt.s32.totalorder %s30, 3
        %s638 = scalar_select %p637, %s30, 3
        %s639 = scalar_lea.vmem %s9, %s638
        %p640 = pneg %p255
        %p641 = pneg %p252
        %p642 = scmp.lt.s32.totalorder %s30, 3
        %s643 = scalar_select %p642, %s30, 3
        %s644 = smul.addr %s643, 4
        %s645 = smul.addr %s644, 4
        %s646 = scalar_lea.vmem %s10, %s645
        %p647 = pneg %p281
        %p648 = pneg %p278
        %p649 = scmp.lt.s32.totalorder %s30, 3
        %s650 = scalar_select %p649, %s30, 3
        %s651 = scalar_lea.vmem %s11, %s650
        %p652 = pneg %p307
        %p653 = pneg %p304
        %p654 = scmp.lt.s32.totalorder %s30, 3
        %s655 = scalar_select %p654, %s30, 3
        %s656 = scalar_lea.vmem %s12, %s655
        %p657 = pneg %p333
        %p658 = pneg %p330
        %p659 = scmp.lt.s32.totalorder %s30, 3
        %s660 = scalar_select %p659, %s30, 3
        %s661 = scalar_lea.vmem %s13, %s660
        %p662 = pneg %p359
        %p663 = pneg %p356
        %p664 = scmp.lt.s32.totalorder %s30, 3
        %s665 = scalar_select %p664, %s30, 3
        %s666 = smul.addr %s665, 4
        %s667 = smul.addr %s666, 4
        %s668 = scalar_lea.vmem %s14, %s667
        %p669 = pneg %p385
        %p670 = pneg %p382
        %p671 = scmp.lt.s32.totalorder %s30, 3
        %s672 = scalar_select %p671, %s30, 3
        %s673 = scalar_lea.vmem %s15, %s672
        %p674 = pneg %p411
        %p675 = pneg %p408
        %p676 = scmp.lt.s32.totalorder %s30, 3
        %s677 = scalar_select %p676, %s30, 3
        %s678 = smul.addr %s677, 16
        %s679 = smul.addr %s678, 4
        %s680 = scalar_lea.vmem %s16, %s679
        %p681 = pneg %p437
        %p682 = pneg %p434
        %p683 = scmp.lt.s32.totalorder %s30, 3
        %s684 = scalar_select %p683, %s30, 3
        %s685 = scalar_lea.vmem %s17, %s684
        %p686 = pneg %p463
        %p687 = pneg %p460
        %p688 = pneg %p484
        %p689 = pneg %p481
        %p690 = scmp.lt.s32.totalorder %s30, 3
        %s691 = scalar_select %p690, %s30, 3
        %s692 = scalar_lea.vmem %s6, %s691
        %p693 = scmp.lt.s32.totalorder %s30, 3
        %s694 = scalar_select %p693, %s30, 3
        %s695 = scalar_lea.vmem %s7, %s694
        %p696 = scmp.lt.s32.totalorder %s30, 3
        %s697 = scalar_select %p696, %s30, 3
        %s698 = smul.addr %s697, 4
        %s699 = smul.addr %s698, 4
        %s700 = scalar_lea.vmem %s8, %s699
        %p701 = scmp.lt.s32.totalorder %s30, 3
        %s702 = scalar_select %p701, %s30, 3
        %s703 = scalar_lea.vmem %s9, %s702
        %p704 = scmp.lt.s32.totalorder %s30, 3
        %s705 = scalar_select %p704, %s30, 3
        %s706 = smul.addr %s705, 4
        %s707 = smul.addr %s706, 4
        %s708 = scalar_lea.vmem %s10, %s707
        %p709 = scmp.lt.s32.totalorder %s30, 3
        %s710 = scalar_select %p709, %s30, 3
        %s711 = scalar_lea.vmem %s11, %s710
        %p712 = scmp.lt.s32.totalorder %s30, 3
        %s713 = scalar_select %p712, %s30, 3
        %s714 = scalar_lea.vmem %s12, %s713
        %p715 = scmp.lt.s32.totalorder %s30, 3
        %s716 = scalar_select %p715, %s30, 3
        %s717 = scalar_lea.vmem %s13, %s716
        %p718 = scmp.lt.s32.totalorder %s30, 3
        %s719 = scalar_select %p718, %s30, 3
        %s720 = smul.addr %s719, 4
        %s721 = smul.addr %s720, 4
        %s722 = scalar_lea.vmem %s14, %s721
        %p723 = scmp.lt.s32.totalorder %s30, 3
        %s724 = scalar_select %p723, %s30, 3
        %s725 = scalar_lea.vmem %s15, %s724
        %p726 = scmp.lt.s32.totalorder %s30, 3
        %s727 = scalar_select %p726, %s30, 3
        %s728 = smul.addr %s727, 16
        %s729 = smul.addr %s728, 4
        %s730 = scalar_lea.vmem %s16, %s729
        %p731 = scmp.lt.s32.totalorder %s30, 3
        %s732 = scalar_select %p731, %s30, 3
        %s733 = scalar_lea.vmem %s17, %s732
        %p735 = scmp.eq.s32.totalorder %s30, 0
        // Predicated region
        $region93: #{tpu_custom_call.1} parent=91 // pred_check
          %p736 = pneg %p735
        $region94: #{tpu_custom_call.1} parent=91 // pred_check_branch
          %738 = sbr.rel (%p736) target = $region96
        $region95: #{tpu_custom_call.1} parent=91 // pred_region
          %v739 = vld [vmem:[%s0] sm:$0xff]
          %v740 = vld [vmem:[%s0 + $0x8] sm:$0xff]
          %vm741 = vcmask 261120
          %742 = vst.msk [vmem:[#allocation2] sm:$0xff] %vm741, %v739
          %743 = vst.msk [vmem:[#allocation2 + $0x8] sm:$0xff] %vm741, %v740
        $region96: #{tpu_custom_call.1} parent=91 // pred_fallthru
          _
        %v744 = vld [vmem:[#allocation2] sm:$0xff]
        %v745 = vld [vmem:[#allocation2 + $0x8] sm:$0xff]
        %v746 = vld [vmem:[%s692] sm:$0x1]
        %v747 = vld [vmem:[%s695] sm:$0x1]
        %vm748 = vcmask 261120
        %v749 = vsel %vm748, %v744, 0.0
        %750 = vadd.xlane.f32.xlu0 %v749
        %v751 = vpop.xlane.xlu0 %750
        %v752 = vsel %vm748, %v745, 0.0
        %753 = vadd.xlane.f32.xlu0 %v752
        %v754 = vpop.xlane.xlu0 %753
        %v755 = vrcp.pop 32.0
        %v756 = vmul.f32 %v751, %v755
        %v757 = vmul.f32 %v754, %v755
        %v758 = vsub.f32 %v744, %v756
        %v759 = vsub.f32 %v745, %v757
        %v760 = vmul.f32 %v758, %v758
        %v761 = vmul.f32 %v759, %v759
        %v762 = vsel %vm748, %v760, 0.0
        %763 = vadd.xlane.f32.xlu0 %v762
        %v764 = vpop.xlane.xlu0 %763
        %v765 = vsel %vm748, %v761, 0.0
        %766 = vadd.xlane.f32.xlu0 %v765
        %v767 = vpop.xlane.xlu0 %766
        %v768 = vmul.f32 %v764, %v755
        %v769 = vmul.f32 %v767, %v755
        %v770 = vadd.f32 %v768, 1e-05
        %v771 = vadd.f32 %v769, 1e-05
        %v772 = vrsqrt.pop %v770
        %v773 = vrsqrt.pop %v771
        %v774 = vmul.f32 %v758, %v772
        %v775 = vmul.f32 %v759, %v773
        %v777 = vlaneseq
        %v778 = vshrl.u32 %v777, 7
        %v779 = vsub.s32 0, %v778
        %v780 = vrot.slane %v746, %v779
        %v782 = vmul.f32 %v774, %v780
        %v783 = vmul.f32 %v775, %v780
        %v785 = vlaneseq
        %v786 = vshrl.u32 %v785, 7
        %v787 = vsub.s32 0, %v786
        %v788 = vrot.slane %v747, %v787
        %v790 = vadd.f32 %v782, %v788
        %v791 = vadd.f32 %v783, %v788
        %v792 = vpack.c.bf16 %v791, %v790
        %v793 = vld [vmem:[%s700] sm:$0xf]
        %v794 = vld [vmem:[%s700 + $0x4] sm:$0xf]
        %v795 = vld [vmem:[%s700 + $0x8] sm:$0xf]
        %v796 = vld [vmem:[%s700 + $0xc] sm:$0xf]
        %v797 = vld [vmem:[%s703] sm:$0x1]
        %v799 = vlaneseq
        %v800 = vshrl.u32 %v799, 7
        %v801 = vsub.s32 0, %v800
        %v802 = vrot.slane %v797, %v801
        %v808 = vunpack.c.l.b16 %v793
        %v809 = vunpack.c.l.b16 %v794
        %v810 = vunpack.c.l.b16 %v795
        %v811 = vunpack.c.l.b16 %v796
        %v812 = vpack.c.b16 %v809, %v808
        %v813 = vpack.c.b16 %v811, %v810
        %v817 = vsel %vm748, %v792, 0
        %819 = vmatprep.subr.bf16.mxu0 0
        %820 = vmatpush1.bf16.msra.mxu0 %v812
        %821 = vmatprep.subr.bf16.mxu0 0
        %822 = vmatpush1.bf16.msra.mxu0 %v813
        %823 = vmatprep.subr.bf16.mxu0 0
        %824 = vmatpush1.bf16.msra.mxu0 0
        %825 = vmatprep.subr.bf16.mxu0 0
        %826 = vmatpush1.bf16.msra.mxu0 0
        %827 = vmatprep.subr.bf16.mxu0 0
        %828 = vmatpush1.bf16.msra.mxu0 0
        %829 = vmatprep.subr.bf16.mxu0 0
        %830 = vmatpush1.bf16.msra.mxu0 0
        %831 = vmatprep.subr.bf16.mxu0 0
        %832 = vmatpush1.bf16.msra.mxu0 0
        %833 = vmatprep.subr.bf16.mxu0 0
        %834 = vmatpush1.bf16.msra.mxu0 0
        %835 = vmatprep.subr.bf16.mxu0 0
        %836 = vmatpush1.bf16.msra.mxu0 0
        %837 = vmatprep.subr.bf16.mxu0 0
        %838 = vmatpush1.bf16.msra.mxu0 0
        %839 = vmatprep.subr.bf16.mxu0 0
        %840 = vmatpush1.bf16.msra.mxu0 0
        %841 = vmatprep.subr.bf16.mxu0 0
        %842 = vmatpush1.bf16.msra.mxu0 0
        %843 = vmatprep.subr.bf16.mxu0 0
        %844 = vmatpush1.bf16.msra.mxu0 0
        %845 = vmatprep.subr.bf16.mxu0 0
        %846 = vmatpush1.bf16.msra.mxu0 0
        %847 = vmatprep.subr.bf16.mxu0 0
        %848 = vmatpush1.bf16.msra.mxu0 0
        %849 = vmatprep.subr.bf16.mxu0 0
        %850 = vmatpush1.bf16.msra.mxu0 0
        %851 = vmatprep.mubr.bf16.mxu0 0
        %852 = vmatmul.mubr.bf16.gmra.mrb[0].mxu0 %v817
        %v853 = vpop.f32.mrb[0].mxu0
        %v854 = vadd.f32 %v802, %v853
        %v855 = vpop.f32.mrb[0].mxu0
        %v856 = vpop.f32.mrb[0].mxu0
        %v857 = vadd.f32 %v802, %v856
        %v858 = vpop.f32.mrb[0].mxu0
        %859 = vdwg.mxu0
        %v860 = vpack.c.bf16 %v854, %v854
        %v861 = vpack.c.bf16 %v857, %v857
        %v862 = vld [vmem:[%s1] sm:$0xff]
        %864 = vrot.lane.b32.xlu0 %v860, 96
        %v865 = vpop.permute.xlu0 %864
        %vm866 = vcmask 64512
        %v868 = vsel %vm866, %v860, 0
        %v871 = vsel %vm866, %v865, 0
        %873 = vmatprep.subr.bf16.mxu0 0
        %874 = vmatpush1.bf16.xpose.msra.mxu0 %v871
        %875 = vmatprep.subr.bf16.mxu0 0
        %876 = vmatpush1.bf16.xpose.msra.mxu0 0
        %877 = vmatprep.subr.bf16.mxu0 0
        %878 = vmatpush1.bf16.xpose.msra.mxu0 0
        %879 = vmatprep.subr.bf16.mxu0 0
        %880 = vmatpush1.bf16.xpose.msra.mxu0 0
        %881 = vmatprep.subr.bf16.mxu0 0
        %882 = vmatpush1.bf16.xpose.msra.mxu0 0
        %883 = vmatprep.subr.bf16.mxu0 0
        %884 = vmatpush1.bf16.xpose.msra.mxu0 0
        %885 = vmatprep.subr.bf16.mxu0 0
        %886 = vmatpush1.bf16.xpose.msra.mxu0 0
        %887 = vmatprep.subr.bf16.mxu0 0
        %888 = vmatpush1.bf16.xpose.msra.mxu0 0
        %889 = vmatprep.subr.bf16.mxu0 0
        %890 = vmatpush1.bf16.xpose.msra.mxu0 0
        %891 = vmatprep.subr.bf16.mxu0 0
        %892 = vmatpush1.bf16.xpose.msra.mxu0 0
        %893 = vmatprep.subr.bf16.mxu0 0
        %894 = vmatpush1.bf16.xpose.msra.mxu0 0
        %895 = vmatprep.subr.bf16.mxu0 0
        %896 = vmatpush1.bf16.xpose.msra.mxu0 0
        %897 = vmatprep.subr.bf16.mxu0 0
        %898 = vmatpush1.bf16.xpose.msra.mxu0 0
        %899 = vmatprep.subr.bf16.mxu0 0
        %900 = vmatpush1.bf16.xpose.msra.mxu0 0
        %901 = vmatprep.subr.bf16.mxu0 0
        %902 = vmatpush1.bf16.xpose.msra.mxu0 0
        %903 = vmatprep.subr.bf16.mxu0 0
        %904 = vmatpush1.bf16.xpose.msra.mxu0 0
        %905 = vmatprep.mubr.bf16.mxu0 0
        %906 = vmatmul.mubr.bf16.gmra.mrb[0].mxu0 %v868
        %v907 = vpop.f32.mrb[0].mxu0
        %v908 = vadd.f32 %v862, %v907
        %v909 = vpop.f32.mrb[0].mxu0
        %v910 = vpop.f32.mrb[0].mxu0
        %v911 = vpop.f32.mrb[0].mxu0
        %912 = vdwg.mxu0
        %914 = vrot.lane.b32.xlu0 %v861, 96
        %v915 = vpop.permute.xlu0 %914
        %v917 = vsel %vm866, %v861, 0
        %v920 = vsel %vm866, %v915, 0
        %922 = vmatprep.subr.bf16.mxu0 0
        %923 = vmatpush1.bf16.xpose.msra.mxu0 %v920
        %924 = vmatprep.subr.bf16.mxu0 0
        %925 = vmatpush1.bf16.xpose.msra.mxu0 0
        %926 = vmatprep.subr.bf16.mxu0 0
        %927 = vmatpush1.bf16.xpose.msra.mxu0 0
        %928 = vmatprep.subr.bf16.mxu0 0
        %929 = vmatpush1.bf16.xpose.msra.mxu0 0
        %930 = vmatprep.subr.bf16.mxu0 0
        %931 = vmatpush1.bf16.xpose.msra.mxu0 0
        %932 = vmatprep.subr.bf16.mxu0 0
        %933 = vmatpush1.bf16.xpose.msra.mxu0 0
        %934 = vmatprep.subr.bf16.mxu0 0
        %935 = vmatpush1.bf16.xpose.msra.mxu0 0
        %936 = vmatprep.subr.bf16.mxu0 0
        %937 = vmatpush1.bf16.xpose.msra.mxu0 0
        %938 = vmatprep.subr.bf16.mxu0 0
        %939 = vmatpush1.bf16.xpose.msra.mxu0 0
        %940 = vmatprep.subr.bf16.mxu0 0
        %941 = vmatpush1.bf16.xpose.msra.mxu0 0
        %942 = vmatprep.subr.bf16.mxu0 0
        %943 = vmatpush1.bf16.xpose.msra.mxu0 0
        %944 = vmatprep.subr.bf16.mxu0 0
        %945 = vmatpush1.bf16.xpose.msra.mxu0 0
        %946 = vmatprep.subr.bf16.mxu0 0
        %947 = vmatpush1.bf16.xpose.msra.mxu0 0
        %948 = vmatprep.subr.bf16.mxu0 0
        %949 = vmatpush1.bf16.xpose.msra.mxu0 0
        %950 = vmatprep.subr.bf16.mxu0 0
        %951 = vmatpush1.bf16.xpose.msra.mxu0 0
        %952 = vmatprep.subr.bf16.mxu0 0
        %953 = vmatpush1.bf16.xpose.msra.mxu0 0
        %954 = vmatprep.mubr.bf16.mxu0 0
        %955 = vmatmul.mubr.bf16.gmra.mrb[0].mxu0 %v917
        %v956 = vpop.f32.mrb[0].mxu0
        %v957 = vadd.f32 %v862, %v956
        %v958 = vpop.f32.mrb[0].mxu0
        %v959 = vpop.f32.mrb[0].mxu0
        %v960 = vpop.f32.mrb[0].mxu0
        %961 = vdwg.mxu0
        %v962 = vsel %vm866, %v908, -inf
        %963 = vmax.xlane.f32.xlu0 %v962
        %v964 = vpop.xlane.xlu0 %963
        %v965 = vsel %vm866, %v957, -inf
        %966 = vmax.xlane.f32.xlu0 %v965
        %v967 = vpop.xlane.xlu0 %966
        %v968 = vsub.f32 %v908, %v964
        %v969 = vsub.f32 %v957, %v967
        %v970 = vmul.f32 %v968, 1.442695
        %v971 = vpow.pop %v970
        %v972 = vmul.f32 %v969, 1.442695
        %v973 = vpow.pop %v972
        %v974 = vsel %vm866, %v971, 0.0
        %975 = vadd.xlane.f32.xlu0 %v974
        %v976 = vpop.xlane.xlu0 %975
        %v977 = vsel %vm866, %v973, 0.0
        %978 = vadd.xlane.f32.xlu0 %v977
        %v979 = vpop.xlane.xlu0 %978
        %v980 = vrcp.pop %v976
        %v981 = vrcp.pop %v979
        %v982 = vmul.f32 %v971, %v980
        %v983 = vmul.f32 %v973, %v981
        %v984 = vpack.c.bf16 %v982, %v982
        %v985 = vpack.c.bf16 %v983, %v983
        %986 = vrot.lane.b32.xlu0 %v860, 64
        %v987 = vpop.permute.xlu0 %986
        %v989 = vsel %vm866, %v984, 0
        %vm991 = vcmask 1043456
        %v993 = vsel %vm991, %v987, 0
        %995 = vmatprep.subr.bf16.mxu0 0
        %996 = vmatpush1.bf16.msra.mxu0 %v993
        %997 = vmatprep.subr.bf16.mxu0 0
        %998 = vmatpush1.bf16.msra.mxu0 0
        %999 = vmatprep.subr.bf16.mxu0 0
        %1000 = vmatpush1.bf16.msra.mxu0 0
        %1001 = vmatprep.subr.bf16.mxu0 0
        %1002 = vmatpush1.bf16.msra.mxu0 0
        %1003 = vmatprep.subr.bf16.mxu0 0
        %1004 = vmatpush1.bf16.msra.mxu0 0
        %1005 = vmatprep.subr.bf16.mxu0 0
        %1006 = vmatpush1.bf16.msra.mxu0 0
        %1007 = vmatprep.subr.bf16.mxu0 0
        %1008 = vmatpush1.bf16.msra.mxu0 0
        %1009 = vmatprep.subr.bf16.mxu0 0
        %1010 = vmatpush1.bf16.msra.mxu0 0
        %1011 = vmatprep.subr.bf16.mxu0 0
        %1012 = vmatpush1.bf16.msra.mxu0 0
        %1013 = vmatprep.subr.bf16.mxu0 0
        %1014 = vmatpush1.bf16.msra.mxu0 0
        %1015 = vmatprep.subr.bf16.mxu0 0
        %1016 = vmatpush1.bf16.msra.mxu0 0
        %1017 = vmatprep.subr.bf16.mxu0 0
        %1018 = vmatpush1.bf16.msra.mxu0 0
        %1019 = vmatprep.subr.bf16.mxu0 0
        %1020 = vmatpush1.bf16.msra.mxu0 0
        %1021 = vmatprep.subr.bf16.mxu0 0
        %1022 = vmatpush1.bf16.msra.mxu0 0
        %1023 = vmatprep.subr.bf16.mxu0 0
        %1024 = vmatpush1.bf16.msra.mxu0 0
        %1025 = vmatprep.subr.bf16.mxu0 0
        %1026 = vmatpush1.bf16.msra.mxu0 0
        %1027 = vmatprep.mubr.bf16.mxu0 0
        %1028 = vmatmul.mubr.bf16.gmra.mrb[0].mxu0 %v989
        %v1029 = vpop.f32.mrb[0].mxu0
        %v1030 = vadd.f32 0.0, %v1029
        %v1031 = vpop.f32.mrb[0].mxu0
        %v1032 = vpop.f32.mrb[0].mxu0
        %v1033 = vpop.f32.mrb[0].mxu0
        %1034 = vdwg.mxu0
        %1035 = vrot.lane.b32.xlu0 %v861, 64
        %v1036 = vpop.permute.xlu0 %1035
        %v1038 = vsel %vm866, %v985, 0
        %v1041 = vsel %vm991, %v1036, 0
        %1043 = vmatprep.subr.bf16.mxu0 0
        %1044 = vmatpush1.bf16.msra.mxu0 %v1041
        %1045 = vmatprep.subr.bf16.mxu0 0
        %1046 = vmatpush1.bf16.msra.mxu0 0
        %1047 = vmatprep.subr.bf16.mxu0 0
        %1048 = vmatpush1.bf16.msra.mxu0 0
        %1049 = vmatprep.subr.bf16.mxu0 0
        %1050 = vmatpush1.bf16.msra.mxu0 0
        %1051 = vmatprep.subr.bf16.mxu0 0
        %1052 = vmatpush1.bf16.msra.mxu0 0
        %1053 = vmatprep.subr.bf16.mxu0 0
        %1054 = vmatpush1.bf16.msra.mxu0 0
        %1055 = vmatprep.subr.bf16.mxu0 0
        %1056 = vmatpush1.bf16.msra.mxu0 0
        %1057 = vmatprep.subr.bf16.mxu0 0
        %1058 = vmatpush1.bf16.msra.mxu0 0
        %1059 = vmatprep.subr.bf16.mxu0 0
        %1060 = vmatpush1.bf16.msra.mxu0 0
        %1061 = vmatprep.subr.bf16.mxu0 0
        %1062 = vmatpush1.bf16.msra.mxu0 0
        %1063 = vmatprep.subr.bf16.mxu0 0
        %1064 = vmatpush1.bf16.msra.mxu0 0
        %1065 = vmatprep.subr.bf16.mxu0 0
        %1066 = vmatpush1.bf16.msra.mxu0 0
        %1067 = vmatprep.subr.bf16.mxu0 0
        %1068 = vmatpush1.bf16.msra.mxu0 0
        %1069 = vmatprep.subr.bf16.mxu0 0
        %1070 = vmatpush1.bf16.msra.mxu0 0
        %1071 = vmatprep.subr.bf16.mxu0 0
        %1072 = vmatpush1.bf16.msra.mxu0 0
        %1073 = vmatprep.subr.bf16.mxu0 0
        %1074 = vmatpush1.bf16.msra.mxu0 0
        %1075 = vmatprep.mubr.bf16.mxu0 0
        %1076 = vmatmul.mubr.bf16.gmra.mrb[0].mxu0 %v1038
        %v1077 = vpop.f32.mrb[0].mxu0
        %v1078 = vadd.f32 0.0, %v1077
        %v1079 = vpop.f32.mrb[0].mxu0
        %v1080 = vpop.f32.mrb[0].mxu0
        %v1081 = vpop.f32.mrb[0].mxu0
        %1082 = vdwg.mxu0
        %v1083 = vpack.c.bf16 %v1078, %v1030
        %1084 = vrot.lane.b32.xlu0 %v860, 120
        %v1085 = vpop.permute.xlu0 %1084
        %1086 = vrot.lane.b32.xlu0 %v860, 88
        %v1087 = vpop.permute.xlu0 %1086
        %v1089 = vsel %vm866, %v1085, 0
        %v1092 = vsel %vm866, %v1087, 0
        %1094 = vmatprep.subr.bf16.mxu0 0
        %1095 = vmatpush1.bf16.xpose.msra.mxu0 %v1092
        %1096 = vmatprep.subr.bf16.mxu0 0
        %1097 = vmatpush1.bf16.xpose.msra.mxu0 0
        %1098 = vmatprep.subr.bf16.mxu0 0
        %1099 = vmatpush1.bf16.xpose.msra.mxu0 0
        %1100 = vmatprep.subr.bf16.mxu0 0
        %1101 = vmatpush1.bf16.xpose.msra.mxu0 0
        %1102 = vmatprep.subr.bf16.mxu0 0
        %1103 = vmatpush1.bf16.xpose.msra.mxu0 0
        %1104 = vmatprep.subr.bf16.mxu0 0
        %1105 = vmatpush1.bf16.xpose.msra.mxu0 0
        %1106 = vmatprep.subr.bf16.mxu0 0
        %1107 = vmatpush1.bf16.xpose.msra.mxu0 0
        %1108 = vmatprep.subr.bf16.mxu0 0
        %1109 = vmatpush1.bf16.xpose.msra.mxu0 0
        %1110 = vmatprep.subr.bf16.mxu0 0
        %1111 = vmatpush1.bf16.xpose.msra.mxu0 0
        %1112 = vmatprep.subr.bf16.mxu0 0
        %1113 = vmatpush1.bf16.xpose.msra.mxu0 0
        %1114 = vmatprep.subr.bf16.mxu0 0
        %1115 = vmatpush1.bf16.xpose.msra.mxu0 0
        %1116 = vmatprep.subr.bf16.mxu0 0
        %1117 = vmatpush1.bf16.xpose.msra.mxu0 0
        %1118 = vmatprep.subr.bf16.mxu0 0
        %1119 = vmatpush1.bf16.xpose.msra.mxu0 0
        %1120 = vmatprep.subr.bf16.mxu0 0
        %1121 = vmatpush1.bf16.xpose.msra.mxu0 0
        %1122 = vmatprep.subr.bf16.mxu0 0
        %1123 = vmatpush1.bf16.xpose.msra.mxu0 0
        %1124 = vmatprep.subr.bf16.mxu0 0
        %1125 = vmatpush1.bf16.xpose.msra.mxu0 0
        %1126 = vmatprep.mubr.bf16.mxu0 0
        %1127 = vmatmul.mubr.bf16.gmra.mrb[0].mxu0 %v1089
        %v1128 = vpop.f32.mrb[0].mxu0
        %v1129 = vadd.f32 %v862, %v1128
        %v1130 = vpop.f32.mrb[0].mxu0
        %v1131 = vpop.f32.mrb[0].mxu0
        %v1132 = vpop.f32.mrb[0].mxu0
        %1133 = vdwg.mxu0
        %1134 = vrot.lane.b32.xlu0 %v861, 120
        %v1135 = vpop.permute.xlu0 %1134
        %1136 = vrot.lane.b32.xlu0 %v861, 88
        %v1137 = vpop.permute.xlu0 %1136
        %v1139 = vsel %vm866, %v1135, 0
        %v1142 = vsel %vm866, %v1137, 0
        %1144 = vmatprep.subr.bf16.mxu0 0
        %1145 = vmatpush1.bf16.xpose.msra.mxu0 %v1142
        %1146 = vmatprep.subr.bf16.mxu0 0
        %1147 = vmatpush1.bf16.xpose.msra.mxu0 0
        %1148 = vmatprep.subr.bf16.mxu0 0
        %1149 = vmatpush1.bf16.xpose.msra.mxu0 0
        %1150 = vmatprep.subr.bf16.mxu0 0
        %1151 = vmatpush1.bf16.xpose.msra.mxu0 0
        %1152 = vmatprep.subr.bf16.mxu0 0
        %1153 = vmatpush1.bf16.xpose.msra.mxu0 0
        %1154 = vmatprep.subr.bf16.mxu0 0
        %1155 = vmatpush1.bf16.xpose.msra.mxu0 0
        %1156 = vmatprep.subr.bf16.mxu0 0
        %1157 = vmatpush1.bf16.xpose.msra.mxu0 0
        %1158 = vmatprep.subr.bf16.mxu0 0
        %1159 = vmatpush1.bf16.xpose.msra.mxu0 0
        %1160 = vmatprep.subr.bf16.mxu0 0
        %1161 = vmatpush1.bf16.xpose.msra.mxu0 0
        %1162 = vmatprep.subr.bf16.mxu0 0
        %1163 = vmatpush1.bf16.xpose.msra.mxu0 0
        %1164 = vmatprep.subr.bf16.mxu0 0
        %1165 = vmatpush1.bf16.xpose.msra.mxu0 0
        %1166 = vmatprep.subr.bf16.mxu0 0
        %1167 = vmatpush1.bf16.xpose.msra.mxu0 0
        %1168 = vmatprep.subr.bf16.mxu0 0
        %1169 = vmatpush1.bf16.xpose.msra.mxu0 0
        %1170 = vmatprep.subr.bf16.mxu0 0
        %1171 = vmatpush1.bf16.xpose.msra.mxu0 0
        %1172 = vmatprep.subr.bf16.mxu0 0
        %1173 = vmatpush1.bf16.xpose.msra.mxu0 0
        %1174 = vmatprep.subr.bf16.mxu0 0
        %1175 = vmatpush1.bf16.xpose.msra.mxu0 0
        %1176 = vmatprep.mubr.bf16.mxu0 0
        %1177 = vmatmul.mubr.bf16.gmra.mrb[0].mxu0 %v1139
        %v1178 = vpop.f32.mrb[0].mxu0
        %v1179 = vadd.f32 %v862, %v1178
        %v1180 = vpop.f32.mrb[0].mxu0
        %v1181 = vpop.f32.mrb[0].mxu0
        %v1182 = vpop.f32.mrb[0].mxu0
        %1183 = vdwg.mxu0
        %v1184 = vsel %vm866, %v1129, -inf
        %1185 = vmax.xlane.f32.xlu0 %v1184
        %v1186 = vpop.xlane.xlu0 %1185
        %v1187 = vsel %vm866, %v1179, -inf
        %1188 = vmax.xlane.f32.xlu0 %v1187
        %v1189 = vpop.xlane.xlu0 %1188
        %v1190 = vsub.f32 %v1129, %v1186
        %v1191 = vsub.f32 %v1179, %v1189
        %v1192 = vmul.f32 %v1190, 1.442695
        %v1193 = vpow.pop %v1192
        %v1194 = vmul.f32 %v1191, 1.442695
        %v1195 = vpow.pop %v1194
        %v1196 = vsel %vm866, %v1193, 0.0
        %1197 = vadd.xlane.f32.xlu0 %v1196
        %v1198 = vpop.xlane.xlu0 %1197
        %v1199 = vsel %vm866, %v1195, 0.0
        %1200 = vadd.xlane.f32.xlu0 %v1199
        %v1201 = vpop.xlane.xlu0 %1200
        %v1202 = vrcp.pop %v1198
        %v1203 = vrcp.pop %v1201
        %v1204 = vmul.f32 %v1193, %v1202
        %v1205 = vmul.f32 %v1195, %v1203
        %v1206 = vpack.c.bf16 %v1204, %v1204
        %v1207 = vpack.c.bf16 %v1205, %v1205
        %1208 = vrot.lane.b32.xlu0 %v860, 56
        %v1209 = vpop.permute.xlu0 %1208
        %v1211 = vsel %vm866, %v1206, 0
        %v1214 = vsel %vm991, %v1209, 0
        %1216 = vmatprep.subr.bf16.mxu0 0
        %1217 = vmatpush1.bf16.msra.mxu0 %v1214
        %1218 = vmatprep.subr.bf16.mxu0 0
        %1219 = vmatpush1.bf16.msra.mxu0 0
        %1220 = vmatprep.subr.bf16.mxu0 0
        %1221 = vmatpush1.bf16.msra.mxu0 0
        %1222 = vmatprep.subr.bf16.mxu0 0
        %1223 = vmatpush1.bf16.msra.mxu0 0
        %1224 = vmatprep.subr.bf16.mxu0 0
        %1225 = vmatpush1.bf16.msra.mxu0 0
        %1226 = vmatprep.subr.bf16.mxu0 0
        %1227 = vmatpush1.bf16.msra.mxu0 0
        %1228 = vmatprep.subr.bf16.mxu0 0
        %1229 = vmatpush1.bf16.msra.mxu0 0
        %1230 = vmatprep.subr.bf16.mxu0 0
        %1231 = vmatpush1.bf16.msra.mxu0 0
        %1232 = vmatprep.subr.bf16.mxu0 0
        %1233 = vmatpush1.bf16.msra.mxu0 0
        %1234 = vmatprep.subr.bf16.mxu0 0
        %1235 = vmatpush1.bf16.msra.mxu0 0
        %1236 = vmatprep.subr.bf16.mxu0 0
        %1237 = vmatpush1.bf16.msra.mxu0 0
        %1238 = vmatprep.subr.bf16.mxu0 0
        %1239 = vmatpush1.bf16.msra.mxu0 0
        %1240 = vmatprep.subr.bf16.mxu0 0
        %1241 = vmatpush1.bf16.msra.mxu0 0
        %1242 = vmatprep.subr.bf16.mxu0 0
        %1243 = vmatpush1.bf16.msra.mxu0 0
        %1244 = vmatprep.subr.bf16.mxu0 0
        %1245 = vmatpush1.bf16.msra.mxu0 0
        %1246 = vmatprep.subr.bf16.mxu0 0
        %1247 = vmatpush1.bf16.msra.mxu0 0
        %1248 = vmatprep.mubr.bf16.mxu0 0
        %1249 = vmatmul.mubr.bf16.gmra.mrb[0].mxu0 %v1211
        %v1250 = vpop.f32.mrb[0].mxu0
        %v1251 = vadd.f32 0.0, %v1250
        %v1252 = vpop.f32.mrb[0].mxu0
        %v1253 = vpop.f32.mrb[0].mxu0
        %v1254 = vpop.f32.mrb[0].mxu0
        %1255 = vdwg.mxu0
        %1256 = vrot.lane.b32.xlu0 %v861, 56
        %v1257 = vpop.permute.xlu0 %1256
        %v1259 = vsel %vm866, %v1207, 0
        %v1262 = vsel %vm991, %v1257, 0
        %1264 = vmatprep.subr.bf16.mxu0 0
        %1265 = vmatpush1.bf16.msra.mxu0 %v1262
        %1266 = vmatprep.subr.bf16.mxu0 0
        %1267 = vmatpush1.bf16.msra.mxu0 0
        %1268 = vmatprep.subr.bf16.mxu0 0
        %1269 = vmatpush1.bf16.msra.mxu0 0
        %1270 = vmatprep.subr.bf16.mxu0 0
        %1271 = vmatpush1.bf16.msra.mxu0 0
        %1272 = vmatprep.subr.bf16.mxu0 0
        %1273 = vmatpush1.bf16.msra.mxu0 0
        %1274 = vmatprep.subr.bf16.mxu0 0
        %1275 = vmatpush1.bf16.msra.mxu0 0
        %1276 = vmatprep.subr.bf16.mxu0 0
        %1277 = vmatpush1.bf16.msra.mxu0 0
        %1278 = vmatprep.subr.bf16.mxu0 0
        %1279 = vmatpush1.bf16.msra.mxu0 0
        %1280 = vmatprep.subr.bf16.mxu0 0
        %1281 = vmatpush1.bf16.msra.mxu0 0
        %1282 = vmatprep.subr.bf16.mxu0 0
        %1283 = vmatpush1.bf16.msra.mxu0 0
        %1284 = vmatprep.subr.bf16.mxu0 0
        %1285 = vmatpush1.bf16.msra.mxu0 0
        %1286 = vmatprep.subr.bf16.mxu0 0
        %1287 = vmatpush1.bf16.msra.mxu0 0
        %1288 = vmatprep.subr.bf16.mxu0 0
        %1289 = vmatpush1.bf16.msra.mxu0 0
        %1290 = vmatprep.subr.bf16.mxu0 0
        %1291 = vmatpush1.bf16.msra.mxu0 0
        %1292 = vmatprep.subr.bf16.mxu0 0
        %1293 = vmatpush1.bf16.msra.mxu0 0
        %1294 = vmatprep.subr.bf16.mxu0 0
        %1295 = vmatpush1.bf16.msra.mxu0 0
        %1296 = vmatprep.mubr.bf16.mxu0 0
        %1297 = vmatmul.mubr.bf16.gmra.mrb[0].mxu0 %v1259
        %v1298 = vpop.f32.mrb[0].mxu0
        %v1299 = vadd.f32 0.0, %v1298
        %v1300 = vpop.f32.mrb[0].mxu0
        %v1301 = vpop.f32.mrb[0].mxu0
        %v1302 = vpop.f32.mrb[0].mxu0
        %1303 = vdwg.mxu0
        %v1304 = vpack.c.bf16 %v1299, %v1251
        %1305 = vrot.lane.b32.xlu0 %v860, 112
        %v1306 = vpop.permute.xlu0 %1305
        %1307 = vrot.lane.b32.xlu0 %v860, 80
        %v1308 = vpop.permute.xlu0 %1307
        %v1310 = vsel %vm866, %v1306, 0
        %v1313 = vsel %vm866, %v1308, 0
        %1315 = vmatprep.subr.bf16.mxu0 0
        %1316 = vmatpush1.bf16.xpose.msra.mxu0 %v1313
        %1317 = vmatprep.subr.bf16.mxu0 0
        %1318 = vmatpush1.bf16.xpose.msra.mxu0 0
        %1319 = vmatprep.subr.bf16.mxu0 0
        %1320 = vmatpush1.bf16.xpose.msra.mxu0 0
        %1321 = vmatprep.subr.bf16.mxu0 0
        %1322 = vmatpush1.bf16.xpose.msra.mxu0 0
        %1323 = vmatprep.subr.bf16.mxu0 0
        %1324 = vmatpush1.bf16.xpose.msra.mxu0 0
        %1325 = vmatprep.subr.bf16.mxu0 0
        %1326 = vmatpush1.bf16.xpose.msra.mxu0 0
        %1327 = vmatprep.subr.bf16.mxu0 0
        %1328 = vmatpush1.bf16.xpose.msra.mxu0 0
        %1329 = vmatprep.subr.bf16.mxu0 0
        %1330 = vmatpush1.bf16.xpose.msra.mxu0 0
        %1331 = vmatprep.subr.bf16.mxu0 0
        %1332 = vmatpush1.bf16.xpose.msra.mxu0 0
        %1333 = vmatprep.subr.bf16.mxu0 0
        %1334 = vmatpush1.bf16.xpose.msra.mxu0 0
        %1335 = vmatprep.subr.bf16.mxu0 0
        %1336 = vmatpush1.bf16.xpose.msra.mxu0 0
        %1337 = vmatprep.subr.bf16.mxu0 0
        %1338 = vmatpush1.bf16.xpose.msra.mxu0 0
        %1339 = vmatprep.subr.bf16.mxu0 0
        %1340 = vmatpush1.bf16.xpose.msra.mxu0 0
        %1341 = vmatprep.subr.bf16.mxu0 0
        %1342 = vmatpush1.bf16.xpose.msra.mxu0 0
        %1343 = vmatprep.subr.bf16.mxu0 0
        %1344 = vmatpush1.bf16.xpose.msra.mxu0 0
        %1345 = vmatprep.subr.bf16.mxu0 0
        %1346 = vmatpush1.bf16.xpose.msra.mxu0 0
        %1347 = vmatprep.mubr.bf16.mxu0 0
        %1348 = vmatmul.mubr.bf16.gmra.mrb[0].mxu0 %v1310
        %v1349 = vpop.f32.mrb[0].mxu0
        %v1350 = vadd.f32 %v862, %v1349
        %v1351 = vpop.f32.mrb[0].mxu0
        %v1352 = vpop.f32.mrb[0].mxu0
        %v1353 = vpop.f32.mrb[0].mxu0
        %1354 = vdwg.mxu0
        %1355 = vrot.lane.b32.xlu0 %v861, 112
        %v1356 = vpop.permute.xlu0 %1355
        %1357 = vrot.lane.b32.xlu0 %v861, 80
        %v1358 = vpop.permute.xlu0 %1357
        %v1360 = vsel %vm866, %v1356, 0
        %v1363 = vsel %vm866, %v1358, 0
        %1365 = vmatprep.subr.bf16.mxu0 0
        %1366 = vmatpush1.bf16.xpose.msra.mxu0 %v1363
        %1367 = vmatprep.subr.bf16.mxu0 0
        %1368 = vmatpush1.bf16.xpose.msra.mxu0 0
        %1369 = vmatprep.subr.bf16.mxu0 0
        %1370 = vmatpush1.bf16.xpose.msra.mxu0 0
        %1371 = vmatprep.subr.bf16.mxu0 0
        %1372 = vmatpush1.bf16.xpose.msra.mxu0 0
        %1373 = vmatprep.subr.bf16.mxu0 0
        %1374 = vmatpush1.bf16.xpose.msra.mxu0 0
        %1375 = vmatprep.subr.bf16.mxu0 0
        %1376 = vmatpush1.bf16.xpose.msra.mxu0 0
        %1377 = vmatprep.subr.bf16.mxu0 0
        %1378 = vmatpush1.bf16.xpose.msra.mxu0 0
        %1379 = vmatprep.subr.bf16.mxu0 0
        %1380 = vmatpush1.bf16.xpose.msra.mxu0 0
        %1381 = vmatprep.subr.bf16.mxu0 0
        %1382 = vmatpush1.bf16.xpose.msra.mxu0 0
        %1383 = vmatprep.subr.bf16.mxu0 0
        %1384 = vmatpush1.bf16.xpose.msra.mxu0 0
        %1385 = vmatprep.subr.bf16.mxu0 0
        %1386 = vmatpush1.bf16.xpose.msra.mxu0 0
        %1387 = vmatprep.subr.bf16.mxu0 0
        %1388 = vmatpush1.bf16.xpose.msra.mxu0 0
        %1389 = vmatprep.subr.bf16.mxu0 0
        %1390 = vmatpush1.bf16.xpose.msra.mxu0 0
        %1391 = vmatprep.subr.bf16.mxu0 0
        %1392 = vmatpush1.bf16.xpose.msra.mxu0 0
        %1393 = vmatprep.subr.bf16.mxu0 0
        %1394 = vmatpush1.bf16.xpose.msra.mxu0 0
        %1395 = vmatprep.subr.bf16.mxu0 0
        %1396 = vmatpush1.bf16.xpose.msra.mxu0 0
        %1397 = vmatprep.mubr.bf16.mxu0 0
        %1398 = vmatmul.mubr.bf16.gmra.mrb[0].mxu0 %v1360
        %v1399 = vpop.f32.mrb[0].mxu0
        %v1400 = vadd.f32 %v862, %v1399
        %v1401 = vpop.f32.mrb[0].mxu0
        %v1402 = vpop.f32.mrb[0].mxu0
        %v1403 = vpop.f32.mrb[0].mxu0
        %1404 = vdwg.mxu0
        %v1405 = vsel %vm866, %v1350, -inf
        %1406 = vmax.xlane.f32.xlu0 %v1405
        %v1407 = vpop.xlane.xlu0 %1406
        %v1408 = vsel %vm866, %v1400, -inf
        %1409 = vmax.xlane.f32.xlu0 %v1408
        %v1410 = vpop.xlane.xlu0 %1409
        %v1411 = vsub.f32 %v1350, %v1407
        %v1412 = vsub.f32 %v1400, %v1410
        %v1413 = vmul.f32 %v1411, 1.442695
        %v1414 = vpow.pop %v1413
        %v1415 = vmul.f32 %v1412, 1.442695
        %v1416 = vpow.pop %v1415
        %v1417 = vsel %vm866, %v1414, 0.0
        %1418 = vadd.xlane.f32.xlu0 %v1417
        %v1419 = vpop.xlane.xlu0 %1418
        %v1420 = vsel %vm866, %v1416, 0.0
        %1421 = vadd.xlane.f32.xlu0 %v1420
        %v1422 = vpop.xlane.xlu0 %1421
        %v1423 = vrcp.pop %v1419
        %v1424 = vrcp.pop %v1422
        %v1425 = vmul.f32 %v1414, %v1423
        %v1426 = vmul.f32 %v1416, %v1424
        %v1427 = vpack.c.bf16 %v1425, %v1425
        %v1428 = vpack.c.bf16 %v1426, %v1426
        %1429 = vrot.lane.b32.xlu0 %v860, 48
        %v1430 = vpop.permute.xlu0 %1429
        %v1432 = vsel %vm866, %v1427, 0
        %v1435 = vsel %vm991, %v1430, 0
        %1437 = vmatprep.subr.bf16.mxu0 0
        %1438 = vmatpush1.bf16.msra.mxu0 %v1435
        %1439 = vmatprep.subr.bf16.mxu0 0
        %1440 = vmatpush1.bf16.msra.mxu0 0
        %1441 = vmatprep.subr.bf16.mxu0 0
        %1442 = vmatpush1.bf16.msra.mxu0 0
        %1443 = vmatprep.subr.bf16.mxu0 0
        %1444 = vmatpush1.bf16.msra.mxu0 0
        %1445 = vmatprep.subr.bf16.mxu0 0
        %1446 = vmatpush1.bf16.msra.mxu0 0
        %1447 = vmatprep.subr.bf16.mxu0 0
        %1448 = vmatpush1.bf16.msra.mxu0 0
        %1449 = vmatprep.subr.bf16.mxu0 0
        %1450 = vmatpush1.bf16.msra.mxu0 0
        %1451 = vmatprep.subr.bf16.mxu0 0
        %1452 = vmatpush1.bf16.msra.mxu0 0
        %1453 = vmatprep.subr.bf16.mxu0 0
        %1454 = vmatpush1.bf16.msra.mxu0 0
        %1455 = vmatprep.subr.bf16.mxu0 0
        %1456 = vmatpush1.bf16.msra.mxu0 0
        %1457 = vmatprep.subr.bf16.mxu0 0
        %1458 = vmatpush1.bf16.msra.mxu0 0
        %1459 = vmatprep.subr.bf16.mxu0 0
        %1460 = vmatpush1.bf16.msra.mxu0 0
        %1461 = vmatprep.subr.bf16.mxu0 0
        %1462 = vmatpush1.bf16.msra.mxu0 0
        %1463 = vmatprep.subr.bf16.mxu0 0
        %1464 = vmatpush1.bf16.msra.mxu0 0
        %1465 = vmatprep.subr.bf16.mxu0 0
        %1466 = vmatpush1.bf16.msra.mxu0 0
        %1467 = vmatprep.subr.bf16.mxu0 0
        %1468 = vmatpush1.bf16.msra.mxu0 0
        %1469 = vmatprep.mubr.bf16.mxu0 0
        %1470 = vmatmul.mubr.bf16.gmra.mrb[0].mxu0 %v1432
        %v1471 = vpop.f32.mrb[0].mxu0
        %v1472 = vadd.f32 0.0, %v1471
        %v1473 = vpop.f32.mrb[0].mxu0
        %v1474 = vpop.f32.mrb[0].mxu0
        %v1475 = vpop.f32.mrb[0].mxu0
        %1476 = vdwg.mxu0
        %1477 = vrot.lane.b32.xlu0 %v861, 48
        %v1478 = vpop.permute.xlu0 %1477
        %v1480 = vsel %vm866, %v1428, 0
        %v1483 = vsel %vm991, %v1478, 0
        %1485 = vmatprep.subr.bf16.mxu0 0
        %1486 = vmatpush1.bf16.msra.mxu0 %v1483
        %1487 = vmatprep.subr.bf16.mxu0 0
        %1488 = vmatpush1.bf16.msra.mxu0 0
        %1489 = vmatprep.subr.bf16.mxu0 0
        %1490 = vmatpush1.bf16.msra.mxu0 0
        %1491 = vmatprep.subr.bf16.mxu0 0
        %1492 = vmatpush1.bf16.msra.mxu0 0
        %1493 = vmatprep.subr.bf16.mxu0 0
        %1494 = vmatpush1.bf16.msra.mxu0 0
        %1495 = vmatprep.subr.bf16.mxu0 0
        %1496 = vmatpush1.bf16.msra.mxu0 0
        %1497 = vmatprep.subr.bf16.mxu0 0
        %1498 = vmatpush1.bf16.msra.mxu0 0
        %1499 = vmatprep.subr.bf16.mxu0 0
        %1500 = vmatpush1.bf16.msra.mxu0 0
        %1501 = vmatprep.subr.bf16.mxu0 0
        %1502 = vmatpush1.bf16.msra.mxu0 0
        %1503 = vmatprep.subr.bf16.mxu0 0
        %1504 = vmatpush1.bf16.msra.mxu0 0
        %1505 = vmatprep.subr.bf16.mxu0 0
        %1506 = vmatpush1.bf16.msra.mxu0 0
        %1507 = vmatprep.subr.bf16.mxu0 0
        %1508 = vmatpush1.bf16.msra.mxu0 0
        %1509 = vmatprep.subr.bf16.mxu0 0
        %1510 = vmatpush1.bf16.msra.mxu0 0
        %1511 = vmatprep.subr.bf16.mxu0 0
        %1512 = vmatpush1.bf16.msra.mxu0 0
        %1513 = vmatprep.subr.bf16.mxu0 0
        %1514 = vmatpush1.bf16.msra.mxu0 0
        %1515 = vmatprep.subr.bf16.mxu0 0
        %1516 = vmatpush1.bf16.msra.mxu0 0
        %1517 = vmatprep.mubr.bf16.mxu0 0
        %1518 = vmatmul.mubr.bf16.gmra.mrb[0].mxu0 %v1480
        %v1519 = vpop.f32.mrb[0].mxu0
        %v1520 = vadd.f32 0.0, %v1519
        %v1521 = vpop.f32.mrb[0].mxu0
        %v1522 = vpop.f32.mrb[0].mxu0
        %v1523 = vpop.f32.mrb[0].mxu0
        %1524 = vdwg.mxu0
        %v1525 = vpack.c.bf16 %v1520, %v1472
        %1526 = vrot.lane.b32.xlu0 %v860, 104
        %v1527 = vpop.permute.xlu0 %1526
        %1528 = vrot.lane.b32.xlu0 %v860, 72
        %v1529 = vpop.permute.xlu0 %1528
        %v1531 = vsel %vm866, %v1527, 0
        %v1534 = vsel %vm866, %v1529, 0
        %1536 = vmatprep.subr.bf16.mxu0 0
        %1537 = vmatpush1.bf16.xpose.msra.mxu0 %v1534
        %1538 = vmatprep.subr.bf16.mxu0 0
        %1539 = vmatpush1.bf16.xpose.msra.mxu0 0
        %1540 = vmatprep.subr.bf16.mxu0 0
        %1541 = vmatpush1.bf16.xpose.msra.mxu0 0
        %1542 = vmatprep.subr.bf16.mxu0 0
        %1543 = vmatpush1.bf16.xpose.msra.mxu0 0
        %1544 = vmatprep.subr.bf16.mxu0 0
        %1545 = vmatpush1.bf16.xpose.msra.mxu0 0
        %1546 = vmatprep.subr.bf16.mxu0 0
        %1547 = vmatpush1.bf16.xpose.msra.mxu0 0
        %1548 = vmatprep.subr.bf16.mxu0 0
        %1549 = vmatpush1.bf16.xpose.msra.mxu0 0
        %1550 = vmatprep.subr.bf16.mxu0 0
        %1551 = vmatpush1.bf16.xpose.msra.mxu0 0
        %1552 = vmatprep.subr.bf16.mxu0 0
        %1553 = vmatpush1.bf16.xpose.msra.mxu0 0
        %1554 = vmatprep.subr.bf16.mxu0 0
        %1555 = vmatpush1.bf16.xpose.msra.mxu0 0
        %1556 = vmatprep.subr.bf16.mxu0 0
        %1557 = vmatpush1.bf16.xpose.msra.mxu0 0
        %1558 = vmatprep.subr.bf16.mxu0 0
        %1559 = vmatpush1.bf16.xpose.msra.mxu0 0
        %1560 = vmatprep.subr.bf16.mxu0 0
        %1561 = vmatpush1.bf16.xpose.msra.mxu0 0
        %1562 = vmatprep.subr.bf16.mxu0 0
        %1563 = vmatpush1.bf16.xpose.msra.mxu0 0
        %1564 = vmatprep.subr.bf16.mxu0 0
        %1565 = vmatpush1.bf16.xpose.msra.mxu0 0
        %1566 = vmatprep.subr.bf16.mxu0 0
        %1567 = vmatpush1.bf16.xpose.msra.mxu0 0
        %1568 = vmatprep.mubr.bf16.mxu0 0
        %1569 = vmatmul.mubr.bf16.gmra.mrb[0].mxu0 %v1531
        %v1570 = vpop.f32.mrb[0].mxu0
        %v1571 = vadd.f32 %v862, %v1570
        %v1572 = vpop.f32.mrb[0].mxu0
        %v1573 = vpop.f32.mrb[0].mxu0
        %v1574 = vpop.f32.mrb[0].mxu0
        %1575 = vdwg.mxu0
        %1576 = vrot.lane.b32.xlu0 %v861, 104
        %v1577 = vpop.permute.xlu0 %1576
        %1578 = vrot.lane.b32.xlu0 %v861, 72
        %v1579 = vpop.permute.xlu0 %1578
        %v1581 = vsel %vm866, %v1577, 0
        %v1584 = vsel %vm866, %v1579, 0
        %1586 = vmatprep.subr.bf16.mxu0 0
        %1587 = vmatpush1.bf16.xpose.msra.mxu0 %v1584
        %1588 = vmatprep.subr.bf16.mxu0 0
        %1589 = vmatpush1.bf16.xpose.msra.mxu0 0
        %1590 = vmatprep.subr.bf16.mxu0 0
        %1591 = vmatpush1.bf16.xpose.msra.mxu0 0
        %1592 = vmatprep.subr.bf16.mxu0 0
        %1593 = vmatpush1.bf16.xpose.msra.mxu0 0
        %1594 = vmatprep.subr.bf16.mxu0 0
        %1595 = vmatpush1.bf16.xpose.msra.mxu0 0
        %1596 = vmatprep.subr.bf16.mxu0 0
        %1597 = vmatpush1.bf16.xpose.msra.mxu0 0
        %1598 = vmatprep.subr.bf16.mxu0 0
        %1599 = vmatpush1.bf16.xpose.msra.mxu0 0
        %1600 = vmatprep.subr.bf16.mxu0 0
        %1601 = vmatpush1.bf16.xpose.msra.mxu0 0
        %1602 = vmatprep.subr.bf16.mxu0 0
        %1603 = vmatpush1.bf16.xpose.msra.mxu0 0
        %1604 = vmatprep.subr.bf16.mxu0 0
        %1605 = vmatpush1.bf16.xpose.msra.mxu0 0
        %1606 = vmatprep.subr.bf16.mxu0 0
        %1607 = vmatpush1.bf16.xpose.msra.mxu0 0
        %1608 = vmatprep.subr.bf16.mxu0 0
        %1609 = vmatpush1.bf16.xpose.msra.mxu0 0
        %1610 = vmatprep.subr.bf16.mxu0 0
        %1611 = vmatpush1.bf16.xpose.msra.mxu0 0
        %1612 = vmatprep.subr.bf16.mxu0 0
        %1613 = vmatpush1.bf16.xpose.msra.mxu0 0
        %1614 = vmatprep.subr.bf16.mxu0 0
        %1615 = vmatpush1.bf16.xpose.msra.mxu0 0
        %1616 = vmatprep.subr.bf16.mxu0 0
        %1617 = vmatpush1.bf16.xpose.msra.mxu0 0
        %1618 = vmatprep.mubr.bf16.mxu0 0
        %1619 = vmatmul.mubr.bf16.gmra.mrb[0].mxu0 %v1581
        %v1620 = vpop.f32.mrb[0].mxu0
        %v1621 = vadd.f32 %v862, %v1620
        %v1622 = vpop.f32.mrb[0].mxu0
        %v1623 = vpop.f32.mrb[0].mxu0
        %v1624 = vpop.f32.mrb[0].mxu0
        %1625 = vdwg.mxu0
        %v1626 = vsel %vm866, %v1571, -inf
        %1627 = vmax.xlane.f32.xlu0 %v1626
        %v1628 = vpop.xlane.xlu0 %1627
        %v1629 = vsel %vm866, %v1621, -inf
        %1630 = vmax.xlane.f32.xlu0 %v1629
        %v1631 = vpop.xlane.xlu0 %1630
        %v1632 = vsub.f32 %v1571, %v1628
        %v1633 = vsub.f32 %v1621, %v1631
        %v1634 = vmul.f32 %v1632, 1.442695
        %v1635 = vpow.pop %v1634
        %v1636 = vmul.f32 %v1633, 1.442695
        %v1637 = vpow.pop %v1636
        %v1638 = vsel %vm866, %v1635, 0.0
        %1639 = vadd.xlane.f32.xlu0 %v1638
        %v1640 = vpop.xlane.xlu0 %1639
        %v1641 = vsel %vm866, %v1637, 0.0
        %1642 = vadd.xlane.f32.xlu0 %v1641
        %v1643 = vpop.xlane.xlu0 %1642
        %v1644 = vrcp.pop %v1640
        %v1645 = vrcp.pop %v1643
        %v1646 = vmul.f32 %v1635, %v1644
        %v1647 = vmul.f32 %v1637, %v1645
        %v1648 = vpack.c.bf16 %v1646, %v1646
        %v1649 = vpack.c.bf16 %v1647, %v1647
        %1650 = vrot.lane.b32.xlu0 %v860, 40
        %v1651 = vpop.permute.xlu0 %1650
        %v1653 = vsel %vm866, %v1648, 0
        %v1656 = vsel %vm991, %v1651, 0
        %1658 = vmatprep.subr.bf16.mxu0 0
        %1659 = vmatpush1.bf16.msra.mxu0 %v1656
        %1660 = vmatprep.subr.bf16.mxu0 0
        %1661 = vmatpush1.bf16.msra.mxu0 0
        %1662 = vmatprep.subr.bf16.mxu0 0
        %1663 = vmatpush1.bf16.msra.mxu0 0
        %1664 = vmatprep.subr.bf16.mxu0 0
        %1665 = vmatpush1.bf16.msra.mxu0 0
        %1666 = vmatprep.subr.bf16.mxu0 0
        %1667 = vmatpush1.bf16.msra.mxu0 0
        %1668 = vmatprep.subr.bf16.mxu0 0
        %1669 = vmatpush1.bf16.msra.mxu0 0
        %1670 = vmatprep.subr.bf16.mxu0 0
        %1671 = vmatpush1.bf16.msra.mxu0 0
        %1672 = vmatprep.subr.bf16.mxu0 0
        %1673 = vmatpush1.bf16.msra.mxu0 0
        %1674 = vmatprep.subr.bf16.mxu0 0
        %1675 = vmatpush1.bf16.msra.mxu0 0
        %1676 = vmatprep.subr.bf16.mxu0 0
        %1677 = vmatpush1.bf16.msra.mxu0 0
        %1678 = vmatprep.subr.bf16.mxu0 0
        %1679 = vmatpush1.bf16.msra.mxu0 0
        %1680 = vmatprep.subr.bf16.mxu0 0
        %1681 = vmatpush1.bf16.msra.mxu0 0
        %1682 = vmatprep.subr.bf16.mxu0 0
        %1683 = vmatpush1.bf16.msra.mxu0 0
        %1684 = vmatprep.subr.bf16.mxu0 0
        %1685 = vmatpush1.bf16.msra.mxu0 0
        %1686 = vmatprep.subr.bf16.mxu0 0
        %1687 = vmatpush1.bf16.msra.mxu0 0
        %1688 = vmatprep.subr.bf16.mxu0 0
        %1689 = vmatpush1.bf16.msra.mxu0 0
        %1690 = vmatprep.mubr.bf16.mxu0 0
        %1691 = vmatmul.mubr.bf16.gmra.mrb[0].mxu0 %v1653
        %v1692 = vpop.f32.mrb[0].mxu0
        %v1693 = vadd.f32 0.0, %v1692
        %v1694 = vpop.f32.mrb[0].mxu0
        %v1695 = vpop.f32.mrb[0].mxu0
        %v1696 = vpop.f32.mrb[0].mxu0
        %1697 = vdwg.mxu0
        %1698 = vrot.lane.b32.xlu0 %v861, 40
        %v1699 = vpop.permute.xlu0 %1698
        %v1701 = vsel %vm866, %v1649, 0
        %v1704 = vsel %vm991, %v1699, 0
        %1706 = vmatprep.subr.bf16.mxu0 0
        %1707 = vmatpush1.bf16.msra.mxu0 %v1704
        %1708 = vmatprep.subr.bf16.mxu0 0
        %1709 = vmatpush1.bf16.msra.mxu0 0
        %1710 = vmatprep.subr.bf16.mxu0 0
        %1711 = vmatpush1.bf16.msra.mxu0 0
        %1712 = vmatprep.subr.bf16.mxu0 0
        %1713 = vmatpush1.bf16.msra.mxu0 0
        %1714 = vmatprep.subr.bf16.mxu0 0
        %1715 = vmatpush1.bf16.msra.mxu0 0
        %1716 = vmatprep.subr.bf16.mxu0 0
        %1717 = vmatpush1.bf16.msra.mxu0 0
        %1718 = vmatprep.subr.bf16.mxu0 0
        %1719 = vmatpush1.bf16.msra.mxu0 0
        %1720 = vmatprep.subr.bf16.mxu0 0
        %1721 = vmatpush1.bf16.msra.mxu0 0
        %1722 = vmatprep.subr.bf16.mxu0 0
        %1723 = vmatpush1.bf16.msra.mxu0 0
        %1724 = vmatprep.subr.bf16.mxu0 0
        %1725 = vmatpush1.bf16.msra.mxu0 0
        %1726 = vmatprep.subr.bf16.mxu0 0
        %1727 = vmatpush1.bf16.msra.mxu0 0
        %1728 = vmatprep.subr.bf16.mxu0 0
        %1729 = vmatpush1.bf16.msra.mxu0 0
        %1730 = vmatprep.subr.bf16.mxu0 0
        %1731 = vmatpush1.bf16.msra.mxu0 0
        %1732 = vmatprep.subr.bf16.mxu0 0
        %1733 = vmatpush1.bf16.msra.mxu0 0
        %1734 = vmatprep.subr.bf16.mxu0 0
        %1735 = vmatpush1.bf16.msra.mxu0 0
        %1736 = vmatprep.subr.bf16.mxu0 0
        %1737 = vmatpush1.bf16.msra.mxu0 0
        %1738 = vmatprep.mubr.bf16.mxu0 0
        %1739 = vmatmul.mubr.bf16.gmra.mrb[0].mxu0 %v1701
        %v1740 = vpop.f32.mrb[0].mxu0
        %v1741 = vadd.f32 0.0, %v1740
        %v1742 = vpop.f32.mrb[0].mxu0
        %v1743 = vpop.f32.mrb[0].mxu0
        %v1744 = vpop.f32.mrb[0].mxu0
        %1745 = vdwg.mxu0
        %v1746 = vpack.c.bf16 %v1741, %v1693
        %1748 = vrot.lane.b32.xlu0 %v1304, 8
        %v1749 = vpop.permute.xlu0 %1748
        %1751 = vrot.lane.b32.xlu0 %v1525, 16
        %v1752 = vpop.permute.xlu0 %1751
        %1754 = vrot.lane.b32.xlu0 %v1746, 24
        %v1755 = vpop.permute.xlu0 %1754
        %v1758 = vsel %vm866, %v1083, %v1749
        %vm1759 = vcmask 130048
        %v1761 = vsel %vm1759, %v1758, %v1752
        %vm1762 = vcmask 195584
        %v1764 = vsel %vm1762, %v1761, %v1755
        %v1765 = vld [vmem:[%s708] sm:$0xf]
        %v1766 = vld [vmem:[%s708 + $0x4] sm:$0xf]
        %v1767 = vld [vmem:[%s708 + $0x8] sm:$0xf]
        %v1768 = vld [vmem:[%s708 + $0xc] sm:$0xf]
        %v1769 = vld [vmem:[%s711] sm:$0x1]
        %v1771 = vlaneseq
        %v1772 = vshrl.u32 %v1771, 7
        %v1773 = vsub.s32 0, %v1772
        %v1774 = vrot.slane %v1769, %v1773
        %v1780 = vunpack.c.l.b16 %v1765
        %v1781 = vunpack.c.l.b16 %v1766
        %v1782 = vunpack.c.l.b16 %v1767
        %v1783 = vunpack.c.l.b16 %v1768
        %v1784 = vpack.c.b16 %v1781, %v1780
        %v1785 = vpack.c.b16 %v1783, %v1782
        %v1788 = vsel %vm748, %v1764, 0
        %1790 = vmatprep.subr.bf16.mxu0 0
        %1791 = vmatpush1.bf16.msra.mxu0 %v1784
        %1792 = vmatprep.subr.bf16.mxu0 0
        %1793 = vmatpush1.bf16.msra.mxu0 %v1785
        %1794 = vmatprep.subr.bf16.mxu0 0
        %1795 = vmatpush1.bf16.msra.mxu0 0
        %1796 = vmatprep.subr.bf16.mxu0 0
        %1797 = vmatpush1.bf16.msra.mxu0 0
        %1798 = vmatprep.subr.bf16.mxu0 0
        %1799 = vmatpush1.bf16.msra.mxu0 0
        %1800 = vmatprep.subr.bf16.mxu0 0
        %1801 = vmatpush1.bf16.msra.mxu0 0
        %1802 = vmatprep.subr.bf16.mxu0 0
        %1803 = vmatpush1.bf16.msra.mxu0 0
        %1804 = vmatprep.subr.bf16.mxu0 0
        %1805 = vmatpush1.bf16.msra.mxu0 0
        %1806 = vmatprep.subr.bf16.mxu0 0
        %1807 = vmatpush1.bf16.msra.mxu0 0
        %1808 = vmatprep.subr.bf16.mxu0 0
        %1809 = vmatpush1.bf16.msra.mxu0 0
        %1810 = vmatprep.subr.bf16.mxu0 0
        %1811 = vmatpush1.bf16.msra.mxu0 0
        %1812 = vmatprep.subr.bf16.mxu0 0
        %1813 = vmatpush1.bf16.msra.mxu0 0
        %1814 = vmatprep.subr.bf16.mxu0 0
        %1815 = vmatpush1.bf16.msra.mxu0 0
        %1816 = vmatprep.subr.bf16.mxu0 0
        %1817 = vmatpush1.bf16.msra.mxu0 0
        %1818 = vmatprep.subr.bf16.mxu0 0
        %1819 = vmatpush1.bf16.msra.mxu0 0
        %1820 = vmatprep.subr.bf16.mxu0 0
        %1821 = vmatpush1.bf16.msra.mxu0 0
        %1822 = vmatprep.mubr.bf16.mxu0 0
        %1823 = vmatmul.mubr.bf16.gmra.mrb[0].mxu0 %v1788
        %v1824 = vpop.f32.mrb[0].mxu0
        %v1825 = vadd.f32 %v1774, %v1824
        %v1826 = vpop.f32.mrb[0].mxu0
        %v1827 = vpop.f32.mrb[0].mxu0
        %v1828 = vadd.f32 %v1774, %v1827
        %v1829 = vpop.f32.mrb[0].mxu0
        %1830 = vdwg.mxu0
        %v1831 = vadd.f32 %v744, %v1825
        %v1832 = vadd.f32 %v745, %v1828
        %v1833 = vld [vmem:[%s714] sm:$0x1]
        %v1834 = vld [vmem:[%s717] sm:$0x1]
        %v1835 = vsel %vm748, %v1831, 0.0
        %1836 = vadd.xlane.f32.xlu0 %v1835
        %v1837 = vpop.xlane.xlu0 %1836
        %v1838 = vsel %vm748, %v1832, 0.0
        %1839 = vadd.xlane.f32.xlu0 %v1838
        %v1840 = vpop.xlane.xlu0 %1839
        %v1841 = vmul.f32 %v1837, %v755
        %v1842 = vmul.f32 %v1840, %v755
        %v1843 = vsub.f32 %v1831, %v1841
        %v1844 = vsub.f32 %v1832, %v1842
        %v1845 = vmul.f32 %v1843, %v1843
        %v1846 = vmul.f32 %v1844, %v1844
        %v1847 = vsel %vm748, %v1845, 0.0
        %1848 = vadd.xlane.f32.xlu0 %v1847
        %v1849 = vpop.xlane.xlu0 %1848
        %v1850 = vsel %vm748, %v1846, 0.0
        %1851 = vadd.xlane.f32.xlu0 %v1850
        %v1852 = vpop.xlane.xlu0 %1851
        %v1853 = vmul.f32 %v1849, %v755
        %v1854 = vmul.f32 %v1852, %v755
        %v1855 = vadd.f32 %v1853, 1e-05
        %v1856 = vadd.f32 %v1854, 1e-05
        %v1857 = vrsqrt.pop %v1855
        %v1858 = vrsqrt.pop %v1856
        %v1859 = vmul.f32 %v1843, %v1857
        %v1860 = vmul.f32 %v1844, %v1858
        %v1862 = vlaneseq
        %v1863 = vshrl.u32 %v1862, 7
        %v1864 = vsub.s32 0, %v1863
        %v1865 = vrot.slane %v1833, %v1864
        %v1867 = vmul.f32 %v1859, %v1865
        %v1868 = vmul.f32 %v1860, %v1865
        %v1870 = vlaneseq
        %v1871 = vshrl.u32 %v1870, 7
        %v1872 = vsub.s32 0, %v1871
        %v1873 = vrot.slane %v1834, %v1872
        %v1875 = vadd.f32 %v1867, %v1873
        %v1876 = vadd.f32 %v1868, %v1873
        %v1877 = vpack.c.bf16 %v1876, %v1875
        %v1878 = vld [vmem:[%s722] sm:$0xf]
        %v1879 = vld [vmem:[%s722 + $0x4] sm:$0xf]
        %v1880 = vld [vmem:[%s722 + $0x8] sm:$0xf]
        %v1881 = vld [vmem:[%s722 + $0xc] sm:$0xf]
        %v1882 = vld [vmem:[%s725] sm:$0x1]
        %v1884 = vlaneseq
        %v1885 = vshrl.u32 %v1884, 7
        %v1886 = vsub.s32 0, %v1885
        %v1887 = vrot.slane %v1882, %v1886
        %v1893 = vunpack.c.l.b16 %v1878
        %v1894 = vunpack.c.l.b16 %v1879
        %v1895 = vunpack.c.l.b16 %v1880
        %v1896 = vunpack.c.l.b16 %v1881
        %v1897 = vpack.c.b16 %v1894, %v1893
        %v1898 = vpack.c.b16 %v1896, %v1895
        %v1902 = vsel %vm748, %v1877, 0
        %1904 = vmatprep.subr.bf16.mxu0 0
        %1905 = vmatpush1.bf16.msra.mxu0 %v1897
        %1906 = vmatprep.subr.bf16.mxu0 0
        %1907 = vmatpush1.bf16.msra.mxu0 %v1898
        %1908 = vmatprep.subr.bf16.mxu0 0
        %1909 = vmatpush1.bf16.msra.mxu0 0
        %1910 = vmatprep.subr.bf16.mxu0 0
        %1911 = vmatpush1.bf16.msra.mxu0 0
        %1912 = vmatprep.subr.bf16.mxu0 0
        %1913 = vmatpush1.bf16.msra.mxu0 0
        %1914 = vmatprep.subr.bf16.mxu0 0
        %1915 = vmatpush1.bf16.msra.mxu0 0
        %1916 = vmatprep.subr.bf16.mxu0 0
        %1917 = vmatpush1.bf16.msra.mxu0 0
        %1918 = vmatprep.subr.bf16.mxu0 0
        %1919 = vmatpush1.bf16.msra.mxu0 0
        %1920 = vmatprep.subr.bf16.mxu0 0
        %1921 = vmatpush1.bf16.msra.mxu0 0
        %1922 = vmatprep.subr.bf16.mxu0 0
        %1923 = vmatpush1.bf16.msra.mxu0 0
        %1924 = vmatprep.subr.bf16.mxu0 0
        %1925 = vmatpush1.bf16.msra.mxu0 0
        %1926 = vmatprep.subr.bf16.mxu0 0
        %1927 = vmatpush1.bf16.msra.mxu0 0
        %1928 = vmatprep.subr.bf16.mxu0 0
        %1929 = vmatpush1.bf16.msra.mxu0 0
        %1930 = vmatprep.subr.bf16.mxu0 0
        %1931 = vmatpush1.bf16.msra.mxu0 0
        %1932 = vmatprep.subr.bf16.mxu0 0
        %1933 = vmatpush1.bf16.msra.mxu0 0
        %1934 = vmatprep.subr.bf16.mxu0 0
        %1935 = vmatpush1.bf16.msra.mxu0 0
        %1936 = vmatprep.mubr.bf16.mxu0 0
        %1937 = vmatmul.mubr.bf16.gmra.mrb[0].mxu0 %v1902
        %v1938 = vpop.f32.mrb[0].mxu0
        %v1939 = vadd.f32 %v1887, %v1938
        %v1940 = vpop.f32.mrb[0].mxu0
        %v1941 = vpop.f32.mrb[0].mxu0
        %v1942 = vadd.f32 %v1887, %v1941
        %v1943 = vpop.f32.mrb[0].mxu0
        %1944 = vdwg.mxu0
        %v1945 = vmul.f32 %v1939, 1.702
        %v1946 = vmul.f32 %v1942, 1.702
        %v1947 = vxor.u32 %v1945, 2147483648
        %v1948 = vxor.u32 %v1946, 2147483648
        %v1949 = vmul.f32 %v1947, 1.442695
        %v1950 = vpow.pop %v1949
        %v1951 = vmul.f32 %v1948, 1.442695
        %v1952 = vpow.pop %v1951
        %v1953 = vadd.f32 %v1950, 1.0
        %v1954 = vadd.f32 %v1952, 1.0
        %v1955 = vrcp.pop %v1953
        %v1956 = vmul.f32 1.0, %v1955
        %v1957 = vrcp.pop %v1954
        %v1958 = vmul.f32 1.0, %v1957
        %v1959 = vmul.f32 %v1939, %v1956
        %v1960 = vmul.f32 %v1942, %v1958
        %v1961 = vpack.c.bf16 %v1960, %v1959
        %v1962 = vld [vmem:[%s730] sm:$0xf]
        %v1963 = vld [vmem:[%s730 + $0x4] sm:$0xf]
        %v1964 = vld [vmem:[%s730 + $0x8] sm:$0xf]
        %v1965 = vld [vmem:[%s730 + $0xc] sm:$0xf]
        %v1966 = vld [vmem:[%s730 + $0x10] sm:$0xf]
        %v1967 = vld [vmem:[%s730 + $0x14] sm:$0xf]
        %v1968 = vld [vmem:[%s730 + $0x18] sm:$0xf]
        %v1969 = vld [vmem:[%s730 + $0x1c] sm:$0xf]
        %v1970 = vld [vmem:[%s730 + $0x20] sm:$0xf]
        %v1971 = vld [vmem:[%s730 + $0x24] sm:$0xf]
        %v1972 = vld [vmem:[%s730 + $0x28] sm:$0xf]
        %v1973 = vld [vmem:[%s730 + $0x2c] sm:$0xf]
        %v1974 = vld [vmem:[%s730 + $0x30] sm:$0xf]
        %v1975 = vld [vmem:[%s730 + $0x34] sm:$0xf]
        %v1976 = vld [vmem:[%s730 + $0x38] sm:$0xf]
        %v1977 = vld [vmem:[%s730 + $0x3c] sm:$0xf]
        %v1978 = vld [vmem:[%s733] sm:$0x1]
        %v1980 = vlaneseq
        %v1981 = vshrl.u32 %v1980, 7
        %v1982 = vsub.s32 0, %v1981
        %v1983 = vrot.slane %v1978, %v1982
        %v2001 = vunpack.c.l.b16 %v1962
        %v2002 = vunpack.c.l.b16 %v1963
        %v2003 = vunpack.c.l.b16 %v1964
        %v2004 = vunpack.c.l.b16 %v1965
        %v2005 = vunpack.c.l.b16 %v1966
        %v2006 = vunpack.c.l.b16 %v1967
        %v2007 = vunpack.c.l.b16 %v1968
        %v2008 = vunpack.c.l.b16 %v1969
        %v2009 = vunpack.c.l.b16 %v1970
        %v2010 = vunpack.c.l.b16 %v1971
        %v2011 = vunpack.c.l.b16 %v1972
        %v2012 = vunpack.c.l.b16 %v1973
        %v2013 = vunpack.c.l.b16 %v1974
        %v2014 = vunpack.c.l.b16 %v1975
        %v2015 = vunpack.c.l.b16 %v1976
        %v2016 = vunpack.c.l.b16 %v1977
        %v2017 = vpack.c.b16 %v2002, %v2001
        %v2018 = vpack.c.b16 %v2004, %v2003
        %v2019 = vpack.c.b16 %v2006, %v2005
        %v2020 = vpack.c.b16 %v2008, %v2007
        %v2021 = vpack.c.b16 %v2010, %v2009
        %v2022 = vpack.c.b16 %v2012, %v2011
        %v2023 = vpack.c.b16 %v2014, %v2013
        %v2024 = vpack.c.b16 %v2016, %v2015
        %2033 = vmatprep.subr.bf16.mxu0 0
        %2034 = vmatpush1.bf16.msra.mxu0 %v2017
        %2035 = vmatprep.subr.bf16.mxu0 0
        %2036 = vmatpush1.bf16.msra.mxu0 %v2018
        %2037 = vmatprep.subr.bf16.mxu0 0
        %2038 = vmatpush1.bf16.msra.mxu0 %v2019
        %2039 = vmatprep.subr.bf16.mxu0 0
        %2040 = vmatpush1.bf16.msra.mxu0 %v2020
        %2041 = vmatprep.subr.bf16.mxu0 0
        %2042 = vmatpush1.bf16.msra.mxu0 %v2021
        %2043 = vmatprep.subr.bf16.mxu0 0
        %2044 = vmatpush1.bf16.msra.mxu0 %v2022
        %2045 = vmatprep.subr.bf16.mxu0 0
        %2046 = vmatpush1.bf16.msra.mxu0 %v2023
        %2047 = vmatprep.subr.bf16.mxu0 0
        %2048 = vmatpush1.bf16.msra.mxu0 %v2024
        %2049 = vmatprep.subr.bf16.mxu0 0
        %2050 = vmatpush1.bf16.msra.mxu0 0
        %2051 = vmatprep.subr.bf16.mxu0 0
        %2052 = vmatpush1.bf16.msra.mxu0 0
        %2053 = vmatprep.subr.bf16.mxu0 0
        %2054 = vmatpush1.bf16.msra.mxu0 0
        %2055 = vmatprep.subr.bf16.mxu0 0
        %2056 = vmatpush1.bf16.msra.mxu0 0
        %2057 = vmatprep.subr.bf16.mxu0 0
        %2058 = vmatpush1.bf16.msra.mxu0 0
        %2059 = vmatprep.subr.bf16.mxu0 0
        %2060 = vmatpush1.bf16.msra.mxu0 0
        %2061 = vmatprep.subr.bf16.mxu0 0
        %2062 = vmatpush1.bf16.msra.mxu0 0
        %2063 = vmatprep.subr.bf16.mxu0 0
        %2064 = vmatpush1.bf16.msra.mxu0 0
        %2065 = vmatprep.mubr.bf16.mxu0 0
        %2066 = vmatmul.mubr.bf16.gmra.mrb[0].mxu0 %v1961
        %v2067 = vpop.f32.mrb[0].mxu0
        %v2068 = vadd.f32 %v1983, %v2067
        %v2069 = vpop.f32.mrb[0].mxu0
        %v2070 = vpop.f32.mrb[0].mxu0
        %v2071 = vadd.f32 %v1983, %v2070
        %v2072 = vpop.f32.mrb[0].mxu0
        %2073 = vdwg.mxu0
        %v2074 = vadd.f32 %v1831, %v2068
        %v2075 = vadd.f32 %v1832, %v2071
        %2076 = vst.msk [vmem:[#allocation2] sm:$0xff] %vm748, %v2074
        %2077 = vst.msk [vmem:[#allocation2 + $0x8] sm:$0xff] %vm748, %v2075
        %p2078 = scmp.eq.s32.totalorder %s30, 3
        // Predicated region
        $region97: #{tpu_custom_call.1} parent=91 // pred_check
          %p2079 = pneg %p2078
        $region98: #{tpu_custom_call.1} parent=91 // pred_check_branch
          %2081 = sbr.rel (%p2079) target = $region100
        $region99: #{tpu_custom_call.1} parent=91 // pred_region
          %v2082 = vld [vmem:[%s2] sm:$0xff]
          %v2083 = vld [vmem:[%s2 + $0x8] sm:$0xff]
          %2085 = vset.pattern.permute.xlu0 0
          %2086 = vperm.xlu0 %2085, %v2082
          %v2087 = vpop.permute.xlu0 %2086
          %2090 = vset.pattern.permute.xlu0 0
          %2091 = vperm.xlu0 %2090, %v2083
          %v2092 = vpop.permute.xlu0 %2091
          %v2094 = vmul.f32 %v2074, %v2087
          %v2095 = vmul.f32 %v2075, %v2092
          %v2096 = vsel %vm748, %v2094, 0.0
          %v2097 = vrot.slane %v2096, 4
          %v2098 = vadd.f32 %v2096, %v2097
          %v2099 = vrot.slane %v2098, 2
          %v2100 = vadd.f32 %v2098, %v2099
          %v2101 = vrot.slane %v2100, 1
          %v2102 = vadd.f32 %v2100, %v2101
          %v2103 = vsel %vm748, %v2095, 0.0
          %v2104 = vrot.slane %v2103, 4
          %v2105 = vadd.f32 %v2103, %v2104
          %v2106 = vrot.slane %v2105, 2
          %v2107 = vadd.f32 %v2105, %v2106
          %v2108 = vrot.slane %v2107, 1
          %v2109 = vadd.f32 %v2107, %v2108
          %v2110 = vld [vmem:[%s3] sm:$0x1]
          %v2111 = vld [vmem:[%s4] sm:$0x1]
          %vm2114 = vcmask 1041409
          %v2115 = vsel %vm2114, %v2109, %v2102
          %vm2117 = vcmask 254976
          %v2118 = vsel %vm2117, %v2115, 0.0
          %2119 = vadd.xlane.f32.xlu0 %v2118
          %v2120 = vpop.xlane.xlu0 %2119
          %v2121 = vmul.f32 %v2120, %v755
          %v2123 = vrot.slane %v2121, 1
          %v2126 = vsub.f32 %v2102, %v2121
          %v2127 = vsub.f32 %v2109, %v2123
          %v2128 = vmul.f32 %v2126, %v2126
          %v2129 = vmul.f32 %v2127, %v2127
          %v2132 = vrot.slane %v2129, 7
          %v2133 = vsel %vm2114, %v2132, %v2128
          %v2135 = vsel %vm2117, %v2133, 0.0
          %2136 = vadd.xlane.f32.xlu0 %v2135
          %v2137 = vpop.xlane.xlu0 %2136
          %v2138 = vmul.f32 %v2137, %v755
          %v2139 = vadd.f32 %v2138, 1e-05
          %v2140 = vrsqrt.pop %v2139
          %v2142 = vrot.slane %v2140, 1
          %v2145 = vmul.f32 %v2126, %v2140
          %v2146 = vmul.f32 %v2127, %v2142
          %v2148 = vlaneseq
          %v2149 = vshrl.u32 %v2148, 7
          %v2150 = vsub.s32 0, %v2149
          %v2151 = vrot.slane %v2110, %v2150
          %v2153 = vmul.f32 %v2145, %v2151
          %v2154 = vmul.f32 %v2146, %v2151
          %v2156 = vlaneseq
          %v2157 = vshrl.u32 %v2156, 7
          %v2158 = vsub.s32 0, %v2157
          %v2159 = vrot.slane %v2111, %v2158
          %v2161 = vadd.f32 %v2153, %v2159
          %v2162 = vadd.f32 %v2154, %v2159
          %v2163 = vld [vmem:[%s5] sm:$0xff]
          %v2164 = vld [vmem:[%s5 + $0x8] sm:$0xff]
          %v2165 = vld [vmem:[%s5 + $0x10] sm:$0xff]
          %v2166 = vld [vmem:[%s5 + $0x18] sm:$0xff]
          %v2169 = vrot.slane %v2162, 7
          %v2170 = vsel %vm2114, %v2169, %v2161
          %v2171 = vsel %vm748, %v2170, 0
          %2173 = vmatprep.subr.mxu0 0.0
          %2174 = vmatpush1.msra.mxu0 %v2163
          %2175 = vmatprep.subr.mxu0 0.0
          %2176 = vmatpush1.msra.mxu0 %v2164
          %2177 = vmatprep.subr.mxu0 0.0
          %2178 = vmatpush1.msra.mxu0 %v2165
          %2179 = vmatprep.subr.mxu0 0.0
          %2180 = vmatpush1.msra.mxu0 %v2166
          %2181 = vmatprep.subr.mxu0 0.0
          %2182 = vmatpush1.msra.mxu0 0.0
          %2183 = vmatprep.subr.mxu0 0.0
          %2184 = vmatpush1.msra.mxu0 0.0
          %2185 = vmatprep.subr.mxu0 0.0
          %2186 = vmatpush1.msra.mxu0 0.0
          %2187 = vmatprep.subr.mxu0 0.0
          %2188 = vmatpush1.msra.mxu0 0.0
          %2189 = vmatprep.subr.mxu0 0.0
          %2190 = vmatpush1.msra.mxu0 0.0
          %2191 = vmatprep.subr.mxu0 0.0
          %2192 = vmatpush1.msra.mxu0 0.0
          %2193 = vmatprep.subr.mxu0 0.0
          %2194 = vmatpush1.msra.mxu0 0.0
          %2195 = vmatprep.subr.mxu0 0.0
          %2196 = vmatpush1.msra.mxu0 0.0
          %2197 = vmatprep.subr.mxu0 0.0
          %2198 = vmatpush1.msra.mxu0 0.0
          %2199 = vmatprep.subr.mxu0 0.0
          %2200 = vmatpush1.msra.mxu0 0.0
          %2201 = vmatprep.subr.mxu0 0.0
          %2202 = vmatpush1.msra.mxu0 0.0
          %2203 = vmatprep.subr.mxu0 0.0
          %2204 = vmatpush1.msra.mxu0 0.0
          %2205 = vmatprep.subr.mxu0 0.0
          %2206 = vmatpush1.msra.mxu0 0.0
          %2207 = vmatprep.subr.mxu0 0.0
          %2208 = vmatpush1.msra.mxu0 0.0
          %2209 = vmatprep.subr.mxu0 0.0
          %2210 = vmatpush1.msra.mxu0 0.0
          %2211 = vmatprep.subr.mxu0 0.0
          %2212 = vmatpush1.msra.mxu0 0.0
          %2213 = vmatprep.subr.mxu0 0.0
          %2214 = vmatpush1.msra.mxu0 0.0
          %2215 = vmatprep.subr.mxu0 0.0
          %2216 = vmatpush1.msra.mxu0 0.0
          %2217 = vmatprep.subr.mxu0 0.0
          %2218 = vmatpush1.msra.mxu0 0.0
          %2219 = vmatprep.subr.mxu0 0.0
          %2220 = vmatpush1.msra.mxu0 0.0
          %2221 = vmatprep.subr.mxu0 0.0
          %2222 = vmatpush1.msra.mxu0 0.0
          %2223 = vmatprep.subr.mxu0 0.0
          %2224 = vmatpush1.msra.mxu0 0.0
          %2225 = vmatprep.subr.mxu0 0.0
          %2226 = vmatpush1.msra.mxu0 0.0
          %2227 = vmatprep.subr.mxu0 0.0
          %2228 = vmatpush1.msra.mxu0 0.0
          %2229 = vmatprep.subr.mxu0 0.0
          %2230 = vmatpush1.msra.mxu0 0.0
          %2231 = vmatprep.subr.mxu0 0.0
          %2232 = vmatpush1.msra.mxu0 0.0
          %2233 = vmatprep.subr.mxu0 0.0
          %2234 = vmatpush1.msra.mxu0 0.0
          %2235 = vmatprep.subr.mxu0 0.0
          %2236 = vmatpush1.msra.mxu0 0.0
          %2237 = vmatprep.mubr.f32.mxu0 0.0
          %2238 = vmatmul.mubr.f32.gmra.mrb[0].mxu0 %v2171
          %v2239 = vpop.f32.mrb[0].mxu0
          %v2240 = vadd.f32 0.0, %v2239
          %v2241 = vpop.f32.mrb[0].mxu0
          %2242 = vdwg.mxu0
          %vm2243 = vcmask 517120
          %2244 = vst.msk [vmem:[#allocation3] sm:$0x3] %vm2243, %v2240
        $region100: #{tpu_custom_call.1} parent=91 // pred_fallthru
          _
        // Predicated region
        $region101: #{tpu_custom_call.1} parent=91 // pred_check
          %p2245 = pneg %p481
        $region102: #{tpu_custom_call.1} parent=91 // pred_check_branch
          %2247 = sbr.rel (%p2245) target = $region104
        $region103: #{tpu_custom_call.1} parent=91 // pred_region
          %s2249 = ssub.s32 32, 32
          %2250 = vsyncadd [#allocation4], %s2249
          %s2252 = sshll.u32 [#allocation3], 4
          %s2253 = int_to_ptr.vmem [resolvable:$true] %s2252
          %2255 = dma.vmem_to_hbm [thread:$0]  %s2253, 32, %s18, [#allocation4]
        $region104: #{tpu_custom_call.1} parent=91 // pred_fallthru
          _
        // Predicated region
        $region105: #{tpu_custom_call.1} parent=91 // pred_check
          %p2256 = pneg %p481
        $region106: #{tpu_custom_call.1} parent=91 // pred_check_branch
          %2258 = sbr.rel (%p2256) target = $region108
        $region107: #{tpu_custom_call.1} parent=91 // pred_region
          %2259 = dma.done [#allocation4], 32
        $region108: #{tpu_custom_call.1} parent=91 // pred_fallthru
          _
      $region92: #{tpu_custom_call.1} parent=5 // pred_fallthru
        _
      %p2260 = scmp.le.s32.totalorder 2, %s25
      // Predicated region
      $region109: #{tpu_custom_call.1} parent=5 // pred_check
        %p2261 = pneg %p2260
      $region110: #{tpu_custom_call.1} parent=5 // pred_check_branch
        %2263 = sbr.rel (%p2261) target = $region112
      $region111: #{tpu_custom_call.1} parent=5 // pred_region
        %s2264 = ssub.s32 %s25, 2
      $region112: #{tpu_custom_call.1} parent=5 // pred_fallthru
        _
    $region6: #{tpu_custom_call.1} parent=1 // loop_footer
      %s29 = sadd.s32 1, %s25
    $region7: #{tpu_custom_call.1} parent=1 // loop_footer_branch
      %24 = sbr.rel target = $region3
    $region8: #{tpu_custom_call.1} parent=1 // loop_exit
      _
    %2265 = vsyncpa [#allocation4], 1
    %s2266 = scalar_lea.sflag [#allocation4], 1
    %2267 = vsyncpa %s2266, 1

</llo_original>
